<compile_context>
chip_gen: v7x
topology: tpu7x:2x2x1
jax: 0.10.0
libtpu: 0.0.40
codegen_flags: <defaults>
</compile_context>

<pallas_src>
import jax
import jax.numpy as jnp
from jax import lax
from jax.experimental import pallas as pl
from jax.experimental.pallas import tpu as pltpu


# ----------------------------------------------------------------------------
# Fused kernel (channel-major: activations are (C, M) with M = H*W on lanes)
# ----------------------------------------------------------------------------
def _bottleneck_kernel(x_ref, w1_ref, b1_ref, w2_ref, b2_ref,
                       w3_ref, b3_ref, wd_ref, bd_ref,
                       o_ref, hp_ref, col_ref):
    # x_ref  : (1, Cin, M)       one image per grid step
    # hp_ref : (Cmid, H+2, W+2)  zero-halo padded h1 (VMEM scratch)
    # col_ref: (9*Cmid, M)       im2col buffer (VMEM scratch)
    _, Cin, M = x_ref.shape
    Cmid, Hp, Wp = hp_ref.shape
    H, W = Hp - 2, Wp - 2
    Cout = o_ref.shape[1]

    x2d = x_ref[0]                                            # (Cin, M)

    # ---- conv1 (1x1) + folded bn1 + relu -----------------------------------
    h1 = jnp.dot(w1_ref[...], x2d, preferred_element_type=jnp.float32)
    h1 = jnp.maximum(h1 + b1_ref[...], 0.0)                   # (Cmid, M)

    # ---- conv2 (3x3, pad 1, stride 1) + folded bn2 + relu ------------------
    # Zero only the halo border (interior is fully overwritten every step).
    hp_ref[:, 0:1, :] = jnp.zeros((Cmid, 1, Wp), jnp.float32)
    hp_ref[:, Hp - 1:Hp, :] = jnp.zeros((Cmid, 1, Wp), jnp.float32)
    hp_ref[:, :, 0:1] = jnp.zeros((Cmid, Hp, 1), jnp.float32)
    hp_ref[:, :, Wp - 1:Wp] = jnp.zeros((Cmid, Hp, 1), jnp.float32)
    hp_ref[:, 1:H + 1, 1:W + 1] = h1.reshape(Cmid, H, W)

    # Build the full im2col (K = 9*Cmid) and run ONE fat-K matmul.
    for t, (di, dj) in enumerate((a, b) for a in range(3) for b in range(3)):
        col_ref[t * Cmid:(t + 1) * Cmid, :] = (
            hp_ref[:, di:di + H, dj:dj + W].reshape(Cmid, H * W))
    h2 = jnp.dot(w2_ref[...], col_ref[...],
                 preferred_element_type=jnp.float32)
    h2 = jnp.maximum(h2 + b2_ref[...], 0.0)                   # (Cmid, M)

    # ---- conv3 (1x1)+bn3, downsample (1x1)+bn, residual add, relu ----------
    y = jnp.dot(w3_ref[...], h2, preferred_element_type=jnp.float32)
    y = y + b3_ref[...]
    res = jnp.dot(wd_ref[...], x2d, preferred_element_type=jnp.float32)
    res = res + bd_ref[...]
    out = jnp.maximum(y + res, 0.0)                           # (Cout, M)

    o_ref[...] = out.reshape(1, Cout, M).astype(o_ref.dtype)  # lane-dense store


# ----------------------------------------------------------------------------
# Wrapper (NCHW in, NCHW out — same interface as the PyTorch module)
# ----------------------------------------------------------------------------
def bottleneck_pallas(x_nchw, p):
    """Bottleneck forward, stride=1 (module defaults), eval-mode BN."""
    N, Cin, H, W = x_nchw.shape
    Cmid = p["w1"].shape[0]
    Cout = p["w3"].shape[0]
    M = H * W

    # Free metadata reshape: NCHW -> (N, C, H*W); no transposes needed.
    x = x_nchw.reshape(N, Cin, M)

    # Fold BN scale into the conv weights (cheap one-time prep, outside kernel).
    w1 = p["w1"][:, :, 0, 0] * p["s1"][:, None]                      # (Cmid, Cin)
    # conv2 weights: OIHW (Cmid, Cmid, 3, 3) -> (O, kh, kw, I) -> (Cmid, 9*Cmid)
    w2 = (jnp.transpose(p["w2"], (0, 2, 3, 1)).reshape(Cmid, 9 * Cmid)
          * p["s2"][:, None])
    w3 = p["w3"][:, :, 0, 0] * p["s3"][:, None]                      # (Cout, Cmid)
    wd = p["wd"][:, :, 0, 0] * p["sd"][:, None]                      # (Cout, Cin)
    b1 = p["b1"][:, None]                                            # (Cmid, 1)
    b2 = p["b2"][:, None]
    b3 = p["b3"][:, None]                                            # (Cout, 1)
    bd = p["bd"][:, None]

    def wspec(shape):
        return pl.BlockSpec(shape, lambda n: (0, 0))

    flops = 2 * N * M * (Cin * Cmid + 9 * Cmid * Cmid
                         + Cmid * Cout + Cin * Cout)
    w_elems = (Cmid * Cin + 9 * Cmid * Cmid + Cout * Cmid + Cout * Cin
               + 2 * Cmid + 2 * Cout)
    bytes_accessed = 4 * (N * Cin * M + N * Cout * M + w_elems)

    out = pl.pallas_call(
        _bottleneck_kernel,
        out_shape=jax.ShapeDtypeStruct((N, Cout, M), x.dtype),
        grid=(N,),
        in_specs=[
            pl.BlockSpec((1, Cin, M), lambda n: (n, 0, 0)),          # x
            wspec((Cmid, Cin)),                                       # w1 (folded)
            wspec((Cmid, 1)),                                         # b1
            wspec((Cmid, 9 * Cmid)),                                  # w2 (folded)
            wspec((Cmid, 1)),                                         # b2
            wspec((Cout, Cmid)),                                      # w3 (folded)
            wspec((Cout, 1)),                                         # b3
            wspec((Cout, Cin)),                                       # wd (folded)
            wspec((Cout, 1)),                                         # bd
        ],
        out_specs=pl.BlockSpec((1, Cout, M), lambda n: (n, 0, 0)),
        scratch_shapes=[
            pltpu.VMEM((Cmid, H + 2, W + 2), jnp.float32),            # padded h1
            pltpu.VMEM((9 * Cmid, M), jnp.float32),                   # im2col
        ],
        compiler_params=pltpu.CompilerParams(
            dimension_semantics=("parallel",),
            vmem_limit_bytes=32 * 1024 * 1024),
        cost_estimate=pl.CostEstimate(
            flops=flops, transcendentals=0, bytes_accessed=bytes_accessed),
    )(x, w1, b1, w2, b2, w3, b3, wd, bd)

    return out.reshape(N, Cout, H, W)                         # free reshape


# ----------------------------------------------------------------------------
# Parameters (deterministic) and pure-JAX reference
# ----------------------------------------------------------------------------
def init_params(key, in_chan, mid_chan, eps=1e-5):
    out_chan = 4 * mid_chan
    ks = jax.random.split(key, 20)

    def conv_w(k, shape):  # PyTorch OIHW layout
        fan_in = shape[1] * shape[2] * shape[3]
        bound = 1.0 / jnp.sqrt(jnp.float32(fan_in))
        return jax.random.uniform(k, shape, jnp.float32, -bound, bound)

    def bn_fold(kg, kb, km, kv, c):
        gamma = jax.random.uniform(kg, (c,), jnp.float32, 0.5, 1.5)
        beta = 0.1 * jax.random.normal(kb, (c,), jnp.float32)
        mean = 0.1 * jax.random.normal(km, (c,), jnp.float32)
        var = jax.random.uniform(kv, (c,), jnp.float32, 0.5, 1.5)
        scale = gamma / jnp.sqrt(var + eps)
        bias = beta - mean * scale
        return scale, bias

    p = {}
    p["w1"] = conv_w(ks[0], (mid_chan, in_chan, 1, 1))
    p["w2"] = conv_w(ks[1], (mid_chan, mid_chan, 3, 3))
    p["w3"] = conv_w(ks[2], (out_chan, mid_chan, 1, 1))
    p["wd"] = conv_w(ks[3], (out_chan, in_chan, 1, 1))
    p["s1"], p["b1"] = bn_fold(ks[4], ks[5], ks[6], ks[7], mid_chan)
    p["s2"], p["b2"] = bn_fold(ks[8], ks[9], ks[10], ks[11], mid_chan)
    p["s3"], p["b3"] = bn_fold(ks[12], ks[13], ks[14], ks[15], out_chan)
    p["sd"], p["bd"] = bn_fold(ks[16], ks[17], ks[18], ks[19], out_chan)
    return p


def bottleneck_ref(x, p):
    def conv(a, w, padding):
        return lax.conv_general_dilated(
            a, w, (1, 1), padding,
            dimension_numbers=("NCHW", "OIHW", "NCHW"))

    def bn(a, s, b):
        return a * s[None, :, None, None] + b[None, :, None, None]

    out = jax.nn.relu(bn(conv(x, p["w1"], "VALID"), p["s1"], p["b1"]))
    out = jax.nn.relu(bn(conv(out, p["w2"], [(1, 1), (1, 1)]), p["s2"], p["b2"]))
    out = bn(conv(out, p["w3"], "VALID"), p["s3"], p["b3"])
    residual = bn(conv(x, p["wd"], "VALID"), p["sd"], p["bd"])
    return jax.nn.relu(out + residual)


# ----------------------------------------------------------------------------
if __name__ == "__main__":
    key = jax.random.PRNGKey(0)
    k_x, k_p = jax.random.split(key)

    N, Cin, H, W = 2, 4, 16, 16
    mid_chan = 4                      # out_chan = 16 -> downsample branch present
    x = jax.random.normal(k_x, (N, Cin, H, W), jnp.float32)
    params = init_params(k_p, Cin, mid_chan)

    fwd = jax.jit(bottleneck_pallas)
    out = jax.block_until_ready(fwd(x, params))

    ref = bottleneck_ref(x, params)
    assert out.shape == (N, 4 * mid_chan, H, W), out.shape
    max_err = float(jnp.max(jnp.abs(out - ref)))
    assert jnp.allclose(out, ref, rtol=1e-4, atol=1e-4), max_err

    print("KERNEL_OK")
</pallas_src>

<mosaic_0001>
module attributes {stable_mosaic.version = 11 : i64} {
  func.func @_bottleneck_kernel(%arg0: i32, %arg1: memref<1x4x256xf32, #tpu.memory_space<vmem>>, %arg2: memref<4x4xf32, #tpu.memory_space<vmem>>, %arg3: memref<4x1xf32, #tpu.memory_space<vmem>>, %arg4: memref<4x36xf32, #tpu.memory_space<vmem>>, %arg5: memref<4x1xf32, #tpu.memory_space<vmem>>, %arg6: memref<16x4xf32, #tpu.memory_space<vmem>>, %arg7: memref<16x1xf32, #tpu.memory_space<vmem>>, %arg8: memref<16x4xf32, #tpu.memory_space<vmem>>, %arg9: memref<16x1xf32, #tpu.memory_space<vmem>>, %arg10: memref<1x16x256xf32, #tpu.memory_space<vmem>>, %arg11: memref<4x18x18xf32, #tpu.memory_space<vmem>>, %arg12: memref<36x256xf32, #tpu.memory_space<vmem>>) attributes {dimension_semantics = [#tpu.dimension_semantics<parallel>], iteration_bounds = array<i64: 2>, scalar_prefetch = 0 : i64, scratch_operands = 2 : i64, tpu.core_type = #tpu.core_type<tc>, window_params = [{transform_indices = @transform_0, window_bounds = array<i64: 1, 4, 256>}, {pipeline_mode = #tpu.pipeline_mode<synchronous>, transform_indices = @transform_1, window_bounds = array<i64: 4, 4>}, {pipeline_mode = #tpu.pipeline_mode<synchronous>, transform_indices = @transform_2, window_bounds = array<i64: 4, 1>}, {pipeline_mode = #tpu.pipeline_mode<synchronous>, transform_indices = @transform_3, window_bounds = array<i64: 4, 36>}, {pipeline_mode = #tpu.pipeline_mode<synchronous>, transform_indices = @transform_4, window_bounds = array<i64: 4, 1>}, {pipeline_mode = #tpu.pipeline_mode<synchronous>, transform_indices = @transform_5, window_bounds = array<i64: 16, 4>}, {pipeline_mode = #tpu.pipeline_mode<synchronous>, transform_indices = @transform_6, window_bounds = array<i64: 16, 1>}, {pipeline_mode = #tpu.pipeline_mode<synchronous>, transform_indices = @transform_7, window_bounds = array<i64: 16, 4>}, {pipeline_mode = #tpu.pipeline_mode<synchronous>, transform_indices = @transform_8, window_bounds = array<i64: 16, 1>}, {transform_indices = @transform_9, window_bounds = array<i64: 1, 16, 256>}]} {
    %c0 = arith.constant 0 : index
    %c0_0 = arith.constant 0 : index
    %c0_1 = arith.constant 0 : index
    %0 = vector.load %arg1[%c0, %c0_0, %c0_1] : memref<1x4x256xf32, #tpu.memory_space<vmem>>, vector<1x4x256xf32>
    %1 = vector.shape_cast %0 : vector<1x4x256xf32> to vector<4x256xf32>
    %c0_2 = arith.constant 0 : index
    %c0_3 = arith.constant 0 : index
    %2 = vector.load %arg2[%c0_2, %c0_3] : memref<4x4xf32, #tpu.memory_space<vmem>>, vector<4x4xf32>
    %cst = arith.constant dense<0.000000e+00> : vector<4x256xf32>
    %3 = tpu.matmul %2, %1, %cst {dimension_numbers = #tpu.dot_dimension_numbers<[1], [0], [0], [1], [0, 0, 1, 1], [], []>} : vector<4x4xf32>, vector<4x256xf32>, vector<4x256xf32> -> vector<4x256xf32>
    %c0_4 = arith.constant 0 : index
    %c0_5 = arith.constant 0 : index
    %4 = vector.load %arg3[%c0_4, %c0_5] : memref<4x1xf32, #tpu.memory_space<vmem>>, vector<4x1xf32>
    %5 = vector.broadcast %4 : vector<4x1xf32> to vector<4x256xf32>
    %6 = arith.addf %3, %5 : vector<4x256xf32>
    %cst_6 = arith.constant 0.000000e+00 : f32
    %7 = vector.broadcast %cst_6 : f32 to vector<4x256xf32>
    %8 = arith.maximumf %6, %7 : vector<4x256xf32>
    %cst_7 = arith.constant 0.000000e+00 : f32
    %9 = vector.broadcast %cst_7 : f32 to vector<4x1x18xf32>
    %c0_8 = arith.constant 0 : index
    %c0_9 = arith.constant 0 : index
    %c0_10 = arith.constant 0 : index
    %10 = vector.load %arg11[%c0_8, %c0_9, %c0_10] : memref<4x18x18xf32, #tpu.memory_space<vmem>>, vector<4x1x18xf32>
    tpu.vector_store %arg11[%c0_8, %c0_9, %c0_10], %9 {strides = array<i32>} : memref<4x18x18xf32, #tpu.memory_space<vmem>>, vector<4x1x18xf32>,
    %cst_11 = arith.constant 0.000000e+00 : f32
    %11 = vector.broadcast %cst_11 : f32 to vector<4x1x18xf32>
    %c0_12 = arith.constant 0 : index
    %c17 = arith.constant 17 : index
    %c0_13 = arith.constant 0 : index
    %12 = vector.load %arg11[%c0_12, %c17, %c0_13] : memref<4x18x18xf32, #tpu.memory_space<vmem>>, vector<4x1x18xf32>
    tpu.vector_store %arg11[%c0_12, %c17, %c0_13], %11 {strides = array<i32>} : memref<4x18x18xf32, #tpu.memory_space<vmem>>, vector<4x1x18xf32>,
    %cst_14 = arith.constant 0.000000e+00 : f32
    %13 = vector.broadcast %cst_14 : f32 to vector<4x18x1xf32>
    %c0_15 = arith.constant 0 : index
    %c0_16 = arith.constant 0 : index
    %c0_17 = arith.constant 0 : index
    %14 = vector.load %arg11[%c0_15, %c0_16, %c0_17] : memref<4x18x18xf32, #tpu.memory_space<vmem>>, vector<4x18x1xf32>
    tpu.vector_store %arg11[%c0_15, %c0_16, %c0_17], %13 {strides = array<i32>} : memref<4x18x18xf32, #tpu.memory_space<vmem>>, vector<4x18x1xf32>,
    %cst_18 = arith.constant 0.000000e+00 : f32
    %15 = vector.broadcast %cst_18 : f32 to vector<4x18x1xf32>
    %c0_19 = arith.constant 0 : index
    %c0_20 = arith.constant 0 : index
    %c17_21 = arith.constant 17 : index
    %16 = vector.load %arg11[%c0_19, %c0_20, %c17_21] : memref<4x18x18xf32, #tpu.memory_space<vmem>>, vector<4x18x1xf32>
    tpu.vector_store %arg11[%c0_19, %c0_20, %c17_21], %15 {strides = array<i32>} : memref<4x18x18xf32, #tpu.memory_space<vmem>>, vector<4x18x1xf32>,
    %17 = vector.shape_cast %8 : vector<4x256xf32> to vector<4x16x16xf32>
    %c0_22 = arith.constant 0 : index
    %c1 = arith.constant 1 : index
    %c1_23 = arith.constant 1 : index
    %18 = vector.load %arg11[%c0_22, %c1, %c1_23] : memref<4x18x18xf32, #tpu.memory_space<vmem>>, vector<4x16x16xf32>
    tpu.vector_store %arg11[%c0_22, %c1, %c1_23], %17 {strides = array<i32>} : memref<4x18x18xf32, #tpu.memory_space<vmem>>, vector<4x16x16xf32>,
    %c0_24 = arith.constant 0 : index
    %c0_25 = arith.constant 0 : index
    %c0_26 = arith.constant 0 : index
    %19 = vector.load %arg11[%c0_24, %c0_25, %c0_26] : memref<4x18x18xf32, #tpu.memory_space<vmem>>, vector<4x16x16xf32>
    %20 = vector.shape_cast %19 : vector<4x16x16xf32> to vector<4x256xf32>
    %c0_27 = arith.constant 0 : index
    %c0_28 = arith.constant 0 : index
    %21 = vector.load %arg12[%c0_27, %c0_28] : memref<36x256xf32, #tpu.memory_space<vmem>>, vector<4x256xf32>
    tpu.vector_store %arg12[%c0_27, %c0_28], %20 {strides = array<i32>} : memref<36x256xf32, #tpu.memory_space<vmem>>, vector<4x256xf32>,
    %c0_29 = arith.constant 0 : index
    %c0_30 = arith.constant 0 : index
    %c1_31 = arith.constant 1 : index
    %22 = vector.load %arg11[%c0_29, %c0_30, %c1_31] : memref<4x18x18xf32, #tpu.memory_space<vmem>>, vector<4x16x16xf32>
    %23 = vector.shape_cast %22 : vector<4x16x16xf32> to vector<4x256xf32>
    %c4 = arith.constant 4 : index
    %c0_32 = arith.constant 0 : index
    %24 = vector.load %arg12[%c4, %c0_32] : memref<36x256xf32, #tpu.memory_space<vmem>>, vector<4x256xf32>
    tpu.vector_store %arg12[%c4, %c0_32], %23 {strides = array<i32>} : memref<36x256xf32, #tpu.memory_space<vmem>>, vector<4x256xf32>,
    %c0_33 = arith.constant 0 : index
    %c0_34 = arith.constant 0 : index
    %c2 = arith.constant 2 : index
    %25 = vector.load %arg11[%c0_33, %c0_34, %c2] : memref<4x18x18xf32, #tpu.memory_space<vmem>>, vector<4x16x16xf32>
    %26 = vector.shape_cast %25 : vector<4x16x16xf32> to vector<4x256xf32>
    %c8 = arith.constant 8 : index
    %c0_35 = arith.constant 0 : index
    %27 = vector.load %arg12[%c8, %c0_35] : memref<36x256xf32, #tpu.memory_space<vmem>>, vector<4x256xf32>
    tpu.vector_store %arg12[%c8, %c0_35], %26 {strides = array<i32>} : memref<36x256xf32, #tpu.memory_space<vmem>>, vector<4x256xf32>,
    %c0_36 = arith.constant 0 : index
    %c1_37 = arith.constant 1 : index
    %c0_38 = arith.constant 0 : index
    %28 = vector.load %arg11[%c0_36, %c1_37, %c0_38] : memref<4x18x18xf32, #tpu.memory_space<vmem>>, vector<4x16x16xf32>
    %29 = vector.shape_cast %28 : vector<4x16x16xf32> to vector<4x256xf32>
    %c12 = arith.constant 12 : index
    %c0_39 = arith.constant 0 : index
    %30 = vector.load %arg12[%c12, %c0_39] : memref<36x256xf32, #tpu.memory_space<vmem>>, vector<4x256xf32>
    tpu.vector_store %arg12[%c12, %c0_39], %29 {strides = array<i32>} : memref<36x256xf32, #tpu.memory_space<vmem>>, vector<4x256xf32>,
    %c0_40 = arith.constant 0 : index
    %c1_41 = arith.constant 1 : index
    %c1_42 = arith.constant 1 : index
    %31 = vector.load %arg11[%c0_40, %c1_41, %c1_42] : memref<4x18x18xf32, #tpu.memory_space<vmem>>, vector<4x16x16xf32>
    %32 = vector.shape_cast %31 : vector<4x16x16xf32> to vector<4x256xf32>
    %c16 = arith.constant 16 : index
    %c0_43 = arith.constant 0 : index
    %33 = vector.load %arg12[%c16, %c0_43] : memref<36x256xf32, #tpu.memory_space<vmem>>, vector<4x256xf32>
    tpu.vector_store %arg12[%c16, %c0_43], %32 {strides = array<i32>} : memref<36x256xf32, #tpu.memory_space<vmem>>, vector<4x256xf32>,
    %c0_44 = arith.constant 0 : index
    %c1_45 = arith.constant 1 : index
    %c2_46 = arith.constant 2 : index
    %34 = vector.load %arg11[%c0_44, %c1_45, %c2_46] : memref<4x18x18xf32, #tpu.memory_space<vmem>>, vector<4x16x16xf32>
    %35 = vector.shape_cast %34 : vector<4x16x16xf32> to vector<4x256xf32>
    %c20 = arith.constant 20 : index
    %c0_47 = arith.constant 0 : index
    %36 = vector.load %arg12[%c20, %c0_47] : memref<36x256xf32, #tpu.memory_space<vmem>>, vector<4x256xf32>
    tpu.vector_store %arg12[%c20, %c0_47], %35 {strides = array<i32>} : memref<36x256xf32, #tpu.memory_space<vmem>>, vector<4x256xf32>,
    %c0_48 = arith.constant 0 : index
    %c2_49 = arith.constant 2 : index
    %c0_50 = arith.constant 0 : index
    %37 = vector.load %arg11[%c0_48, %c2_49, %c0_50] : memref<4x18x18xf32, #tpu.memory_space<vmem>>, vector<4x16x16xf32>
    %38 = vector.shape_cast %37 : vector<4x16x16xf32> to vector<4x256xf32>
    %c24 = arith.constant 24 : index
    %c0_51 = arith.constant 0 : index
    %39 = vector.load %arg12[%c24, %c0_51] : memref<36x256xf32, #tpu.memory_space<vmem>>, vector<4x256xf32>
    tpu.vector_store %arg12[%c24, %c0_51], %38 {strides = array<i32>} : memref<36x256xf32, #tpu.memory_space<vmem>>, vector<4x256xf32>,
    %c0_52 = arith.constant 0 : index
    %c2_53 = arith.constant 2 : index
    %c1_54 = arith.constant 1 : index
    %40 = vector.load %arg11[%c0_52, %c2_53, %c1_54] : memref<4x18x18xf32, #tpu.memory_space<vmem>>, vector<4x16x16xf32>
    %41 = vector.shape_cast %40 : vector<4x16x16xf32> to vector<4x256xf32>
    %c28 = arith.constant 28 : index
    %c0_55 = arith.constant 0 : index
    %42 = vector.load %arg12[%c28, %c0_55] : memref<36x256xf32, #tpu.memory_space<vmem>>, vector<4x256xf32>
    tpu.vector_store %arg12[%c28, %c0_55], %41 {strides = array<i32>} : memref<36x256xf32, #tpu.memory_space<vmem>>, vector<4x256xf32>,
    %c0_56 = arith.constant 0 : index
    %c2_57 = arith.constant 2 : index
    %c2_58 = arith.constant 2 : index
    %43 = vector.load %arg11[%c0_56, %c2_57, %c2_58] : memref<4x18x18xf32, #tpu.memory_space<vmem>>, vector<4x16x16xf32>
    %44 = vector.shape_cast %43 : vector<4x16x16xf32> to vector<4x256xf32>
    %c32 = arith.constant 32 : index
    %c0_59 = arith.constant 0 : index
    %45 = vector.load %arg12[%c32, %c0_59] : memref<36x256xf32, #tpu.memory_space<vmem>>, vector<4x256xf32>
    tpu.vector_store %arg12[%c32, %c0_59], %44 {strides = array<i32>} : memref<36x256xf32, #tpu.memory_space<vmem>>, vector<4x256xf32>,
    %c0_60 = arith.constant 0 : index
    %c0_61 = arith.constant 0 : index
    %46 = vector.load %arg4[%c0_60, %c0_61] : memref<4x36xf32, #tpu.memory_space<vmem>>, vector<4x36xf32>
    %c0_62 = arith.constant 0 : index
    %c0_63 = arith.constant 0 : index
    %47 = vector.load %arg12[%c0_62, %c0_63] : memref<36x256xf32, #tpu.memory_space<vmem>>, vector<36x256xf32>
    %cst_64 = arith.constant dense<0.000000e+00> : vector<4x256xf32>
    %48 = tpu.matmul %46, %47, %cst_64 {dimension_numbers = #tpu.dot_dimension_numbers<[1], [0], [0], [1], [0, 0, 1, 1], [], []>} : vector<4x36xf32>, vector<36x256xf32>, vector<4x256xf32> -> vector<4x256xf32>
    %c0_65 = arith.constant 0 : index
    %c0_66 = arith.constant 0 : index
    %49 = vector.load %arg5[%c0_65, %c0_66] : memref<4x1xf32, #tpu.memory_space<vmem>>, vector<4x1xf32>
    %50 = vector.broadcast %49 : vector<4x1xf32> to vector<4x256xf32>
    %51 = arith.addf %48, %50 : vector<4x256xf32>
    %cst_67 = arith.constant 0.000000e+00 : f32
    %52 = vector.broadcast %cst_67 : f32 to vector<4x256xf32>
    %53 = arith.maximumf %51, %52 : vector<4x256xf32>
    %c0_68 = arith.constant 0 : index
    %c0_69 = arith.constant 0 : index
    %54 = vector.load %arg6[%c0_68, %c0_69] : memref<16x4xf32, #tpu.memory_space<vmem>>, vector<16x4xf32>
    %cst_70 = arith.constant dense<0.000000e+00> : vector<16x256xf32>
    %55 = tpu.matmul %54, %53, %cst_70 {dimension_numbers = #tpu.dot_dimension_numbers<[1], [0], [0], [1], [0, 0, 1, 1], [], []>} : vector<16x4xf32>, vector<4x256xf32>, vector<16x256xf32> -> vector<16x256xf32>
    %c0_71 = arith.constant 0 : index
    %c0_72 = arith.constant 0 : index
    %56 = vector.load %arg7[%c0_71, %c0_72] : memref<16x1xf32, #tpu.memory_space<vmem>>, vector<16x1xf32>
    %57 = vector.broadcast %56 : vector<16x1xf32> to vector<16x256xf32>
    %58 = arith.addf %55, %57 : vector<16x256xf32>
    %c0_73 = arith.constant 0 : index
    %c0_74 = arith.constant 0 : index
    %59 = vector.load %arg8[%c0_73, %c0_74] : memref<16x4xf32, #tpu.memory_space<vmem>>, vector<16x4xf32>
    %cst_75 = arith.constant dense<0.000000e+00> : vector<16x256xf32>
    %60 = tpu.matmul %59, %1, %cst_75 {dimension_numbers = #tpu.dot_dimension_numbers<[1], [0], [0], [1], [0, 0, 1, 1], [], []>} : vector<16x4xf32>, vector<4x256xf32>, vector<16x256xf32> -> vector<16x256xf32>
    %c0_76 = arith.constant 0 : index
    %c0_77 = arith.constant 0 : index
    %61 = vector.load %arg9[%c0_76, %c0_77] : memref<16x1xf32, #tpu.memory_space<vmem>>, vector<16x1xf32>
    %62 = vector.broadcast %61 : vector<16x1xf32> to vector<16x256xf32>
    %63 = arith.addf %60, %62 : vector<16x256xf32>
    %64 = arith.addf %58, %63 : vector<16x256xf32>
    %cst_78 = arith.constant 0.000000e+00 : f32
    %65 = vector.broadcast %cst_78 : f32 to vector<16x256xf32>
    %66 = arith.maximumf %64, %65 : vector<16x256xf32>
    %67 = vector.shape_cast %66 : vector<16x256xf32> to vector<1x16x256xf32>
    %c0_79 = arith.constant 0 : index
    %c0_80 = arith.constant 0 : index
    %c0_81 = arith.constant 0 : index
    %68 = vector.load %arg10[%c0_79, %c0_80, %c0_81] : memref<1x16x256xf32, #tpu.memory_space<vmem>>, vector<1x16x256xf32>
    tpu.vector_store %arg10[%c0_79, %c0_80, %c0_81], %67 {strides = array<i32>} : memref<1x16x256xf32, #tpu.memory_space<vmem>>, vector<1x16x256xf32>,
    return
  }
  func.func @transform_0(%arg0: i32) -> (i32, i32, i32) {
    %c0_i32 = arith.constant 0 : i32
    %c0_i32_0 = arith.constant 0 : i32
    %c0_i32_1 = arith.constant 0 : i32
    return %arg0, %c0_i32, %c0_i32_0 : i32, i32, i32
  }
  func.func @transform_1(%arg0: i32) -> (i32, i32) {
    %c0_i32 = arith.constant 0 : i32
    %c0_i32_0 = arith.constant 0 : i32
    %c0_i32_1 = arith.constant 0 : i32
    return %c0_i32, %c0_i32_0 : i32, i32
  }
  func.func @transform_2(%arg0: i32) -> (i32, i32) {
    %c0_i32 = arith.constant 0 : i32
    %c0_i32_0 = arith.constant 0 : i32
    %c0_i32_1 = arith.constant 0 : i32
    return %c0_i32, %c0_i32_0 : i32, i32
  }
  func.func @transform_3(%arg0: i32) -> (i32, i32) {
    %c0_i32 = arith.constant 0 : i32
    %c0_i32_0 = arith.constant 0 : i32
    %c0_i32_1 = arith.constant 0 : i32
    return %c0_i32, %c0_i32_0 : i32, i32
  }
  func.func @transform_4(%arg0: i32) -> (i32, i32) {
    %c0_i32 = arith.constant 0 : i32
    %c0_i32_0 = arith.constant 0 : i32
    %c0_i32_1 = arith.constant 0 : i32
    return %c0_i32, %c0_i32_0 : i32, i32
  }
  func.func @transform_5(%arg0: i32) -> (i32, i32) {
    %c0_i32 = arith.constant 0 : i32
    %c0_i32_0 = arith.constant 0 : i32
    %c0_i32_1 = arith.constant 0 : i32
    return %c0_i32, %c0_i32_0 : i32, i32
  }
  func.func @transform_6(%arg0: i32) -> (i32, i32) {
    %c0_i32 = arith.constant 0 : i32
    %c0_i32_0 = arith.constant 0 : i32
    %c0_i32_1 = arith.constant 0 : i32
    return %c0_i32, %c0_i32_0 : i32, i32
  }
  func.func @transform_7(%arg0: i32) -> (i32, i32) {
    %c0_i32 = arith.constant 0 : i32
    %c0_i32_0 = arith.constant 0 : i32
    %c0_i32_1 = arith.constant 0 : i32
    return %c0_i32, %c0_i32_0 : i32, i32
  }
  func.func @transform_8(%arg0: i32) -> (i32, i32) {
    %c0_i32 = arith.constant 0 : i32
    %c0_i32_0 = arith.constant 0 : i32
    %c0_i32_1 = arith.constant 0 : i32
    return %c0_i32, %c0_i32_0 : i32, i32
  }
  func.func @transform_9(%arg0: i32) -> (i32, i32, i32) {
    %c0_i32 = arith.constant 0 : i32
    %c0_i32_0 = arith.constant 0 : i32
    %c0_i32_1 = arith.constant 0 : i32
    return %arg0, %c0_i32, %c0_i32_0 : i32, i32, i32
  }
}

</mosaic_0001>

<llo_original>
// kernel: bottleneck_pallas.1
$region0: #{bottleneck_pallas.1}
  #allocation0 [shape = 'u32[]', space=smem, size = 0x4, offset = 0x4, fixed_abs, tag = 'smem constant byte address 0x4 - core index']
  #allocation1 [shape = 'u32[144,128]{1,0:T(1,128)}', space=vmem, size = 0x12000, scoped, tag = 'internal scratch']
  #allocation2 [shape = 'f32[4,18,18]{2,1,0:T(8,128)}', space=vmem, size = 0xc000, scoped, tag = 'scratch operand']
  #allocation3 [shape = 'f32[36,256]{1,0:T(8,128)}', space=vmem, size = 0xa000, scoped, tag = 'scratch operand']
  %s0 = inlined_call_operand.vmem [shape: f32[2,4,256], index: 0, kind: input, shape index: {}]
  %s1 = inlined_call_operand.vmem [shape: f32[4,4], index: 1, kind: input, shape index: {}]
  %s2 = inlined_call_operand.vmem [shape: f32[4,1], index: 2, kind: input, shape index: {}]
  %s3 = inlined_call_operand.vmem [shape: f32[4,36], index: 3, kind: input, shape index: {}]
  %s4 = inlined_call_operand.vmem [shape: f32[4,1], index: 4, kind: input, shape index: {}]
  %s5 = inlined_call_operand.vmem [shape: f32[16,4], index: 5, kind: input, shape index: {}]
  %s6 = inlined_call_operand.vmem [shape: f32[16,1], index: 6, kind: input, shape index: {}]
  %s7 = inlined_call_operand.vmem [shape: f32[16,4], index: 7, kind: input, shape index: {}]
  %s8 = inlined_call_operand.vmem [shape: f32[16,1], index: 8, kind: input, shape index: {}]
  %s9 = inlined_call_operand.vmem [shape: f32[2,16,256], index: 9, kind: output, shape index: {}]
  %s10 = sld [smem:[#allocation0]]
  $region69: #{bottleneck_pallas.1} parent=0
    _
  %s12 = ssub.s32 1, %s10
  %s13 = scalar_select 0, %s12, %s10
  loop: start=0, step=1, limit=4
  $region2: #{bottleneck_pallas.1} parent=0 // loop_pre_header
    _
  $region3: #{bottleneck_pallas.1} parent=0 // loop_header
    %s15 = sphi 0, %s19
    %p16 = scmp.ge.s32.totalorder %s15, 4
    %s25 = sphi 0, %s27
    %s28 = sphi 0, %s25
    %s29 = sphi 0, %s28
    %s45 = sphi 0, %s29
    %s49 = sphi 0, %s49
    %s51 = sphi 0, %s49
    %s52 = sphi 0, %s51
    %s66 = sphi 0, %s52
    %s70 = sphi 0, %s70
    %s72 = sphi 0, %s70
    %s73 = sphi 0, %s72
    %s87 = sphi 0, %s73
    %s91 = sphi 0, %s91
    %s93 = sphi 0, %s91
    %s94 = sphi 0, %s93
    %s108 = sphi 0, %s94
    %s112 = sphi 0, %s112
    %s114 = sphi 0, %s112
    %s115 = sphi 0, %s114
    %s129 = sphi 0, %s115
    %s133 = sphi 0, %s133
    %s135 = sphi 0, %s133
    %s136 = sphi 0, %s135
    %s150 = sphi 0, %s136
    %s154 = sphi 0, %s154
    %s156 = sphi 0, %s154
    %s157 = sphi 0, %s156
    %s171 = sphi 0, %s157
    %s175 = sphi 0, %s175
    %s177 = sphi 0, %s175
    %s178 = sphi 0, %s177
    %s192 = sphi 0, %s178
    %s196 = sphi 0, %s196
    %s198 = sphi 0, %s196
    %s199 = sphi 0, %s198
    %s213 = sphi 0, %s199
    %s219 = sphi 0, %s221
    %s222 = sphi 0, %s219
    %s223 = sphi 0, %s222
    %s239 = sphi 0, %s223
  $region4: #{bottleneck_pallas.1} parent=0 // loop_header_branch
    %18 = sbr.rel (%p16) target = $region8
  $region5: #{bottleneck_pallas.1} parent=0 // loop_body
    %s20 = ssub.s32 %s15, 1
    %s21 = ssub.s32 %s15, 2
    %s22 = sadd.s32 %s15, 1
    %s23 = ssub.s32 %s15, %s22
    %p24 = scmp.eq.s32.totalorder %s23, 0
    %s26 = sadd.s32 %s25, 1
    %s27 = scalar_select %p24, %s25, %s26
    %p30 = pneg %p24
    %p31 = scmp.eq.s32.totalorder %s15, 1
    %p32 = por %p30, %p31
    %p33 = scmp.ne.s32.totalorder %s25, %s28
    %p34 = scmp.eq.s32.totalorder %s15, 0
    %p35 = por %p33, %p34
    %p36 = scmp.ne.s32.totalorder %s25, %s28
    %p37 = scmp.eq.s32.totalorder %s20, 1
    %p38 = por %p36, %p37
    %p39 = scmp.ne.s32.totalorder %s28, %s29
    %p40 = scmp.eq.s32.totalorder %s20, 0
    %p41 = por %p39, %p40
    %p42 = scmp.ne.s32.totalorder %s28, %s29
    %p43 = scmp.eq.s32.totalorder %s21, 1
    %p44 = por %p42, %p43
    %p46 = scmp.ne.s32.totalorder %s29, %s45
    %p47 = scmp.eq.s32.totalorder %s21, 0
    %p48 = por %p46, %p47
    %s50 = sadd.s32 %s49, 1
    %p53 = scmp.eq.s32.totalorder %s15, 1
    %p54 = scmp.ne.s32.totalorder %s49, %s51
    %p55 = scmp.eq.s32.totalorder %s15, 0
    %p56 = por %p54, %p55
    %p57 = scmp.ne.s32.totalorder %s49, %s51
    %p58 = scmp.eq.s32.totalorder %s20, 1
    %p59 = por %p57, %p58
    %p60 = scmp.ne.s32.totalorder %s51, %s52
    %p61 = scmp.eq.s32.totalorder %s20, 0
    %p62 = por %p60, %p61
    %p63 = scmp.ne.s32.totalorder %s51, %s52
    %p64 = scmp.eq.s32.totalorder %s21, 1
    %p65 = por %p63, %p64
    %p67 = scmp.ne.s32.totalorder %s52, %s66
    %p68 = scmp.eq.s32.totalorder %s21, 0
    %p69 = por %p67, %p68
    %s71 = sadd.s32 %s70, 1
    %p74 = scmp.eq.s32.totalorder %s15, 1
    %p75 = scmp.ne.s32.totalorder %s70, %s72
    %p76 = scmp.eq.s32.totalorder %s15, 0
    %p77 = por %p75, %p76
    %p78 = scmp.ne.s32.totalorder %s70, %s72
    %p79 = scmp.eq.s32.totalorder %s20, 1
    %p80 = por %p78, %p79
    %p81 = scmp.ne.s32.totalorder %s72, %s73
    %p82 = scmp.eq.s32.totalorder %s20, 0
    %p83 = por %p81, %p82
    %p84 = scmp.ne.s32.totalorder %s72, %s73
    %p85 = scmp.eq.s32.totalorder %s21, 1
    %p86 = por %p84, %p85
    %p88 = scmp.ne.s32.totalorder %s73, %s87
    %p89 = scmp.eq.s32.totalorder %s21, 0
    %p90 = por %p88, %p89
    %s92 = sadd.s32 %s91, 1
    %p95 = scmp.eq.s32.totalorder %s15, 1
    %p96 = scmp.ne.s32.totalorder %s91, %s93
    %p97 = scmp.eq.s32.totalorder %s15, 0
    %p98 = por %p96, %p97
    %p99 = scmp.ne.s32.totalorder %s91, %s93
    %p100 = scmp.eq.s32.totalorder %s20, 1
    %p101 = por %p99, %p100
    %p102 = scmp.ne.s32.totalorder %s93, %s94
    %p103 = scmp.eq.s32.totalorder %s20, 0
    %p104 = por %p102, %p103
    %p105 = scmp.ne.s32.totalorder %s93, %s94
    %p106 = scmp.eq.s32.totalorder %s21, 1
    %p107 = por %p105, %p106
    %p109 = scmp.ne.s32.totalorder %s94, %s108
    %p110 = scmp.eq.s32.totalorder %s21, 0
    %p111 = por %p109, %p110
    %s113 = sadd.s32 %s112, 1
    %p116 = scmp.eq.s32.totalorder %s15, 1
    %p117 = scmp.ne.s32.totalorder %s112, %s114
    %p118 = scmp.eq.s32.totalorder %s15, 0
    %p119 = por %p117, %p118
    %p120 = scmp.ne.s32.totalorder %s112, %s114
    %p121 = scmp.eq.s32.totalorder %s20, 1
    %p122 = por %p120, %p121
    %p123 = scmp.ne.s32.totalorder %s114, %s115
    %p124 = scmp.eq.s32.totalorder %s20, 0
    %p125 = por %p123, %p124
    %p126 = scmp.ne.s32.totalorder %s114, %s115
    %p127 = scmp.eq.s32.totalorder %s21, 1
    %p128 = por %p126, %p127
    %p130 = scmp.ne.s32.totalorder %s115, %s129
    %p131 = scmp.eq.s32.totalorder %s21, 0
    %p132 = por %p130, %p131
    %s134 = sadd.s32 %s133, 1
    %p137 = scmp.eq.s32.totalorder %s15, 1
    %p138 = scmp.ne.s32.totalorder %s133, %s135
    %p139 = scmp.eq.s32.totalorder %s15, 0
    %p140 = por %p138, %p139
    %p141 = scmp.ne.s32.totalorder %s133, %s135
    %p142 = scmp.eq.s32.totalorder %s20, 1
    %p143 = por %p141, %p142
    %p144 = scmp.ne.s32.totalorder %s135, %s136
    %p145 = scmp.eq.s32.totalorder %s20, 0
    %p146 = por %p144, %p145
    %p147 = scmp.ne.s32.totalorder %s135, %s136
    %p148 = scmp.eq.s32.totalorder %s21, 1
    %p149 = por %p147, %p148
    %p151 = scmp.ne.s32.totalorder %s136, %s150
    %p152 = scmp.eq.s32.totalorder %s21, 0
    %p153 = por %p151, %p152
    %s155 = sadd.s32 %s154, 1
    %p158 = scmp.eq.s32.totalorder %s15, 1
    %p159 = scmp.ne.s32.totalorder %s154, %s156
    %p160 = scmp.eq.s32.totalorder %s15, 0
    %p161 = por %p159, %p160
    %p162 = scmp.ne.s32.totalorder %s154, %s156
    %p163 = scmp.eq.s32.totalorder %s20, 1
    %p164 = por %p162, %p163
    %p165 = scmp.ne.s32.totalorder %s156, %s157
    %p166 = scmp.eq.s32.totalorder %s20, 0
    %p167 = por %p165, %p166
    %p168 = scmp.ne.s32.totalorder %s156, %s157
    %p169 = scmp.eq.s32.totalorder %s21, 1
    %p170 = por %p168, %p169
    %p172 = scmp.ne.s32.totalorder %s157, %s171
    %p173 = scmp.eq.s32.totalorder %s21, 0
    %p174 = por %p172, %p173
    %s176 = sadd.s32 %s175, 1
    %p179 = scmp.eq.s32.totalorder %s15, 1
    %p180 = scmp.ne.s32.totalorder %s175, %s177
    %p181 = scmp.eq.s32.totalorder %s15, 0
    %p182 = por %p180, %p181
    %p183 = scmp.ne.s32.totalorder %s175, %s177
    %p184 = scmp.eq.s32.totalorder %s20, 1
    %p185 = por %p183, %p184
    %p186 = scmp.ne.s32.totalorder %s177, %s178
    %p187 = scmp.eq.s32.totalorder %s20, 0
    %p188 = por %p186, %p187
    %p189 = scmp.ne.s32.totalorder %s177, %s178
    %p190 = scmp.eq.s32.totalorder %s21, 1
    %p191 = por %p189, %p190
    %p193 = scmp.ne.s32.totalorder %s178, %s192
    %p194 = scmp.eq.s32.totalorder %s21, 0
    %p195 = por %p193, %p194
    %s197 = sadd.s32 %s196, 1
    %p200 = scmp.eq.s32.totalorder %s15, 1
    %p201 = scmp.ne.s32.totalorder %s196, %s198
    %p202 = scmp.eq.s32.totalorder %s15, 0
    %p203 = por %p201, %p202
    %p204 = scmp.ne.s32.totalorder %s196, %s198
    %p205 = scmp.eq.s32.totalorder %s20, 1
    %p206 = por %p204, %p205
    %p207 = scmp.ne.s32.totalorder %s198, %s199
    %p208 = scmp.eq.s32.totalorder %s20, 0
    %p209 = por %p207, %p208
    %p210 = scmp.ne.s32.totalorder %s198, %s199
    %p211 = scmp.eq.s32.totalorder %s21, 1
    %p212 = por %p210, %p211
    %p214 = scmp.ne.s32.totalorder %s199, %s213
    %p215 = scmp.eq.s32.totalorder %s21, 0
    %p216 = por %p214, %p215
    %s217 = ssub.s32 %s15, %s22
    %p218 = scmp.eq.s32.totalorder %s217, 0
    %s220 = sadd.s32 %s219, 1
    %s221 = scalar_select %p218, %s219, %s220
    %p224 = pneg %p218
    %p225 = scmp.eq.s32.totalorder %s15, 1
    %p226 = por %p224, %p225
    %p227 = scmp.ne.s32.totalorder %s219, %s222
    %p228 = scmp.eq.s32.totalorder %s15, 0
    %p229 = por %p227, %p228
    %p230 = scmp.ne.s32.totalorder %s219, %s222
    %p231 = scmp.eq.s32.totalorder %s20, 1
    %p232 = por %p230, %p231
    %p233 = scmp.ne.s32.totalorder %s222, %s223
    %p234 = scmp.eq.s32.totalorder %s20, 0
    %p235 = por %p233, %p234
    %p236 = scmp.ne.s32.totalorder %s222, %s223
    %p237 = scmp.eq.s32.totalorder %s21, 1
    %p238 = por %p236, %p237
    %p240 = scmp.ne.s32.totalorder %s223, %s239
    %p241 = scmp.eq.s32.totalorder %s21, 0
    %p242 = por %p240, %p241
    %p243 = scmp.le.s32.totalorder 1, %s15
    %p244 = scmp.lt.s32.totalorder %s15, 3
    %p245 = pnand %p243, %p244
    %p246 = pneg %p245
    // Predicated region
    $region9: #{bottleneck_pallas.1} parent=5 // pred_check
      _
    $region10: #{bottleneck_pallas.1} parent=5 // pred_check_branch
      %248 = sbr.rel (%p245) target = $region12
    $region11: #{bottleneck_pallas.1} parent=5 // pred_region
      %s249 = ssub.s32 %s15, 1
      // Predicated region
      $region13: #{bottleneck_pallas.1} parent=11 // pred_check
        %p250 = pneg %p62
      $region14: #{bottleneck_pallas.1} parent=11 // pred_check_branch
        %252 = sbr.rel (%p250) target = $region16
      $region15: #{bottleneck_pallas.1} parent=11 // pred_region
        _
      $region16: #{bottleneck_pallas.1} parent=11 // pred_fallthru
        _
      // Predicated region
      $region17: #{bottleneck_pallas.1} parent=11 // pred_check
        %p253 = pneg %p83
      $region18: #{bottleneck_pallas.1} parent=11 // pred_check_branch
        %255 = sbr.rel (%p253) target = $region20
      $region19: #{bottleneck_pallas.1} parent=11 // pred_region
        _
      $region20: #{bottleneck_pallas.1} parent=11 // pred_fallthru
        _
      // Predicated region
      $region21: #{bottleneck_pallas.1} parent=11 // pred_check
        %p256 = pneg %p104
      $region22: #{bottleneck_pallas.1} parent=11 // pred_check_branch
        %258 = sbr.rel (%p256) target = $region24
      $region23: #{bottleneck_pallas.1} parent=11 // pred_region
        _
      $region24: #{bottleneck_pallas.1} parent=11 // pred_fallthru
        _
      // Predicated region
      $region25: #{bottleneck_pallas.1} parent=11 // pred_check
        %p259 = pneg %p125
      $region26: #{bottleneck_pallas.1} parent=11 // pred_check_branch
        %261 = sbr.rel (%p259) target = $region28
      $region27: #{bottleneck_pallas.1} parent=11 // pred_region
        _
      $region28: #{bottleneck_pallas.1} parent=11 // pred_fallthru
        _
      // Predicated region
      $region29: #{bottleneck_pallas.1} parent=11 // pred_check
        %p262 = pneg %p146
      $region30: #{bottleneck_pallas.1} parent=11 // pred_check_branch
        %264 = sbr.rel (%p262) target = $region32
      $region31: #{bottleneck_pallas.1} parent=11 // pred_region
        _
      $region32: #{bottleneck_pallas.1} parent=11 // pred_fallthru
        _
      // Predicated region
      $region33: #{bottleneck_pallas.1} parent=11 // pred_check
        %p265 = pneg %p167
      $region34: #{bottleneck_pallas.1} parent=11 // pred_check_branch
        %267 = sbr.rel (%p265) target = $region36
      $region35: #{bottleneck_pallas.1} parent=11 // pred_region
        _
      $region36: #{bottleneck_pallas.1} parent=11 // pred_fallthru
        _
      // Predicated region
      $region37: #{bottleneck_pallas.1} parent=11 // pred_check
        %p268 = pneg %p188
      $region38: #{bottleneck_pallas.1} parent=11 // pred_check_branch
        %270 = sbr.rel (%p268) target = $region40
      $region39: #{bottleneck_pallas.1} parent=11 // pred_region
        _
      $region40: #{bottleneck_pallas.1} parent=11 // pred_fallthru
        _
      // Predicated region
      $region41: #{bottleneck_pallas.1} parent=11 // pred_check
        %p271 = pneg %p209
      $region42: #{bottleneck_pallas.1} parent=11 // pred_check_branch
        %273 = sbr.rel (%p271) target = $region44
      $region43: #{bottleneck_pallas.1} parent=11 // pred_region
        _
      $region44: #{bottleneck_pallas.1} parent=11 // pred_fallthru
        _
    $region12: #{bottleneck_pallas.1} parent=5 // pred_fallthru
      _
    %p274 = scmp.lt.s32.totalorder %s15, 2
    // Predicated region
    $region45: #{bottleneck_pallas.1} parent=5 // pred_check
      %p275 = pneg %p274
    $region46: #{bottleneck_pallas.1} parent=5 // pred_check_branch
      %277 = sbr.rel (%p275) target = $region48
    $region47: #{bottleneck_pallas.1} parent=5 // pred_region
      // Predicated region
      $region49: #{bottleneck_pallas.1} parent=47 // pred_check
        %p278 = pneg %p35
      $region50: #{bottleneck_pallas.1} parent=47 // pred_check_branch
        %280 = sbr.rel (%p278) target = $region52
      $region51: #{bottleneck_pallas.1} parent=47 // pred_region
        %p281 = scmp.lt.s32.totalorder %s15, 1
        %s282 = scalar_select %p281, %s15, 1
        %s283 = smul.addr %s282, 2
        %s284 = smul.addr %s283, 4
        %s285 = scalar_lea.vmem %s0, %s284
      $region52: #{bottleneck_pallas.1} parent=47 // pred_fallthru
        _
    $region48: #{bottleneck_pallas.1} parent=5 // pred_fallthru
      _
    %p286 = scmp.le.s32.totalorder 1, %s15
    %p287 = scmp.lt.s32.totalorder %s15, 3
    %p288 = pnand %p286, %p287
    %p289 = pneg %p288
    // Predicated region
    $region53: #{bottleneck_pallas.1} parent=5 // pred_check
      _
    $region54: #{bottleneck_pallas.1} parent=5 // pred_check_branch
      %291 = sbr.rel (%p288) target = $region56
    $region55: #{bottleneck_pallas.1} parent=5 // pred_region
      %s292 = ssub.s32 %s15, 1
      %p293 = scmp.lt.s32.totalorder %s20, 1
      %s294 = scalar_select %p293, %s20, 1
      %s295 = smul.addr %s294, 2
      %s296 = smul.addr %s295, 4
      %s297 = scalar_lea.vmem %s0, %s296
      %p298 = pneg %p41
      %p299 = pneg %p38
      %p300 = pneg %p62
      %p301 = pneg %p59
      %p302 = pneg %p83
      %p303 = pneg %p80
      %p304 = pneg %p104
      %p305 = pneg %p101
      %p306 = pneg %p125
      %p307 = pneg %p122
      %p308 = pneg %p146
      %p309 = pneg %p143
      %p310 = pneg %p167
      %p311 = pneg %p164
      %p312 = pneg %p188
      %p313 = pneg %p185
      %p314 = pneg %p209
      %p315 = pneg %p206
      %p316 = pneg %p235
      %p317 = pneg %p232
      %p318 = scmp.lt.s32.totalorder %s20, 1
      %s319 = scalar_select %p318, %s20, 1
      %s320 = smul.addr %s319, 4
      %s321 = smul.addr %s320, 8
      %s322 = scalar_lea.vmem %s9, %s321
      %p323 = scmp.lt.s32.totalorder %s20, 1
      %s324 = scalar_select %p323, %s20, 1
      %s325 = smul.addr %s324, 2
      %s326 = smul.addr %s325, 4
      %s327 = scalar_lea.vmem %s0, %s326
      %p328 = scmp.lt.s32.totalorder %s20, 1
      %s329 = scalar_select %p328, %s20, 1
      %s330 = smul.addr %s329, 4
      %s331 = smul.addr %s330, 8
      %s332 = scalar_lea.vmem %s9, %s331
      %v333 = vld [vmem:[%s327] sm:$0xff]
      %v334 = vld [vmem:[%s1] sm:$0xf]
      %v335 = vld [vmem:[%s2] sm:$0xf]
      %337 = vset.pattern.permute.xlu0 0
      %338 = vperm.xlu0 %337, %v335
      %v339 = vpop.permute.xlu0 %338
      %v342 = vcombine.high %v333, %v333
      %vm343 = vcmask 31744
      %v345 = vsel %vm343, %v334, 0
      %vm347 = vcmask 1043456
      %v348 = vsel %vm347, %v333, 0
      %v350 = vsel %vm347, %v342, 0
      %352 = vmatprep.subr.mxu0 %v350
      %353 = vmatpush1.msra.mxu0 %v348
      %354 = vmatprep.subr.mxu0 0.0
      %355 = vmatpush1.msra.mxu0 0.0
      %356 = vmatprep.subr.mxu0 0.0
      %357 = vmatpush1.msra.mxu0 0.0
      %358 = vmatprep.subr.mxu0 0.0
      %359 = vmatpush1.msra.mxu0 0.0
      %360 = vmatprep.subr.mxu0 0.0
      %361 = vmatpush1.msra.mxu0 0.0
      %362 = vmatprep.subr.mxu0 0.0
      %363 = vmatpush1.msra.mxu0 0.0
      %364 = vmatprep.subr.mxu0 0.0
      %365 = vmatpush1.msra.mxu0 0.0
      %366 = vmatprep.subr.mxu0 0.0
      %367 = vmatpush1.msra.mxu0 0.0
      %368 = vmatprep.subr.mxu0 0.0
      %369 = vmatpush1.msra.mxu0 0.0
      %370 = vmatprep.subr.mxu0 0.0
      %371 = vmatpush1.msra.mxu0 0.0
      %372 = vmatprep.subr.mxu0 0.0
      %373 = vmatpush1.msra.mxu0 0.0
      %374 = vmatprep.subr.mxu0 0.0
      %375 = vmatpush1.msra.mxu0 0.0
      %376 = vmatprep.subr.mxu0 0.0
      %377 = vmatpush1.msra.mxu0 0.0
      %378 = vmatprep.subr.mxu0 0.0
      %379 = vmatpush1.msra.mxu0 0.0
      %380 = vmatprep.subr.mxu0 0.0
      %381 = vmatpush1.msra.mxu0 0.0
      %382 = vmatprep.subr.mxu0 0.0
      %383 = vmatpush1.msra.mxu0 0.0
      %384 = vmatprep.subr.mxu0 0.0
      %385 = vmatpush1.msra.mxu0 0.0
      %386 = vmatprep.subr.mxu0 0.0
      %387 = vmatpush1.msra.mxu0 0.0
      %388 = vmatprep.subr.mxu0 0.0
      %389 = vmatpush1.msra.mxu0 0.0
      %390 = vmatprep.subr.mxu0 0.0
      %391 = vmatpush1.msra.mxu0 0.0
      %392 = vmatprep.subr.mxu0 0.0
      %393 = vmatpush1.msra.mxu0 0.0
      %394 = vmatprep.subr.mxu0 0.0
      %395 = vmatpush1.msra.mxu0 0.0
      %396 = vmatprep.subr.mxu0 0.0
      %397 = vmatpush1.msra.mxu0 0.0
      %398 = vmatprep.subr.mxu0 0.0
      %399 = vmatpush1.msra.mxu0 0.0
      %400 = vmatprep.subr.mxu0 0.0
      %401 = vmatpush1.msra.mxu0 0.0
      %402 = vmatprep.subr.mxu0 0.0
      %403 = vmatpush1.msra.mxu0 0.0
      %404 = vmatprep.subr.mxu0 0.0
      %405 = vmatpush1.msra.mxu0 0.0
      %406 = vmatprep.subr.mxu0 0.0
      %407 = vmatpush1.msra.mxu0 0.0
      %408 = vmatprep.subr.mxu0 0.0
      %409 = vmatpush1.msra.mxu0 0.0
      %410 = vmatprep.subr.mxu0 0.0
      %411 = vmatpush1.msra.mxu0 0.0
      %412 = vmatprep.subr.mxu0 0.0
      %413 = vmatpush1.msra.mxu0 0.0
      %414 = vmatprep.subr.mxu0 0.0
      %415 = vmatpush1.msra.mxu0 0.0
      %416 = vmatprep.mubr.f32.mxu0 0.0
      %417 = vmatmul.mubr.f32.gmra.mrb[0].mxu0 %v345
      %v418 = vpop.f32.mrb[0].mxu0
      %v419 = vadd.f32 %v339, %v418
      %v420 = vpop.f32.mrb[0].mxu0
      %v421 = vadd.f32 %v339, %v420
      %422 = vdwg.mxu0
      %v423 = vmax.f32 %v419, 0.0
      %v424 = vmax.f32 %v421, 0.0
      %vm425 = vcmask 139264
      %426 = vst.msk [vmem:[#allocation2] sm:$0x1] %vm425, 0.0
      %427 = vst.msk [vmem:[#allocation2 + $0x18] sm:$0x1] %vm425, 0.0
      %428 = vst.msk [vmem:[#allocation2 + $0x30] sm:$0x1] %vm425, 0.0
      %429 = vst.msk [vmem:[#allocation2 + $0x48] sm:$0x1] %vm425, 0.0
      %430 = vst.msk [vmem:[#allocation2 + $0x11] sm:$0x1] %vm425, 0.0
      %431 = vst.msk [vmem:[#allocation2 + $0x29] sm:$0x1] %vm425, 0.0
      %432 = vst.msk [vmem:[#allocation2 + $0x41] sm:$0x1] %vm425, 0.0
      %433 = vst.msk [vmem:[#allocation2 + $0x59] sm:$0x1] %vm425, 0.0
      %vm434 = vcmask 7168
      %435 = vst.msk [vmem:[#allocation2] sm:$0xff] %vm434, 0.0
      %436 = vst.msk [vmem:[#allocation2 + $0x8] sm:$0xff] %vm434, 0.0
      %vm437 = vcmask 1024
      %438 = vst.msk [vmem:[#allocation2 + $0x10] sm:$0x3] %vm437, 0.0
      %439 = vst.msk [vmem:[#allocation2 + $0x18] sm:$0xff] %vm434, 0.0
      %440 = vst.msk [vmem:[#allocation2 + $0x20] sm:$0xff] %vm434, 0.0
      %441 = vst.msk [vmem:[#allocation2 + $0x28] sm:$0x3] %vm437, 0.0
      %442 = vst.msk [vmem:[#allocation2 + $0x30] sm:$0xff] %vm434, 0.0
      %443 = vst.msk [vmem:[#allocation2 + $0x38] sm:$0xff] %vm434, 0.0
      %444 = vst.msk [vmem:[#allocation2 + $0x40] sm:$0x3] %vm437, 0.0
      %445 = vst.msk [vmem:[#allocation2 + $0x48] sm:$0xff] %vm434, 0.0
      %446 = vst.msk [vmem:[#allocation2 + $0x50] sm:$0xff] %vm434, 0.0
      %447 = vst.msk [vmem:[#allocation2 + $0x58] sm:$0x3] %vm437, 0.0
      %vm448 = vcmask 146568
      %449 = vst.msk [vmem:[#allocation2] sm:$0xff] %vm448, 0.0
      %450 = vst.msk [vmem:[#allocation2 + $0x8] sm:$0xff] %vm448, 0.0
      %vm451 = vcmask 140424
      %452 = vst.msk [vmem:[#allocation2 + $0x10] sm:$0x3] %vm451, 0.0
      %453 = vst.msk [vmem:[#allocation2 + $0x18] sm:$0xff] %vm448, 0.0
      %454 = vst.msk [vmem:[#allocation2 + $0x20] sm:$0xff] %vm448, 0.0
      %455 = vst.msk [vmem:[#allocation2 + $0x28] sm:$0x3] %vm451, 0.0
      %456 = vst.msk [vmem:[#allocation2 + $0x30] sm:$0xff] %vm448, 0.0
      %457 = vst.msk [vmem:[#allocation2 + $0x38] sm:$0xff] %vm448, 0.0
      %458 = vst.msk [vmem:[#allocation2 + $0x40] sm:$0x3] %vm451, 0.0
      %459 = vst.msk [vmem:[#allocation2 + $0x48] sm:$0xff] %vm448, 0.0
      %460 = vst.msk [vmem:[#allocation2 + $0x50] sm:$0xff] %vm448, 0.0
      %461 = vst.msk [vmem:[#allocation2 + $0x58] sm:$0x3] %vm451, 0.0
      %463 = vrot.lane.b32.xlu0 %v423, 112
      %v464 = vpop.permute.xlu0 %463
      %466 = vrot.lane.b32.xlu0 %v423, 96
      %v467 = vpop.permute.xlu0 %466
      %469 = vrot.lane.b32.xlu0 %v423, 80
      %v470 = vpop.permute.xlu0 %469
      %472 = vrot.lane.b32.xlu0 %v423, 64
      %v473 = vpop.permute.xlu0 %472
      %475 = vrot.lane.b32.xlu0 %v423, 48
      %v476 = vpop.permute.xlu0 %475
      %478 = vrot.lane.b32.xlu0 %v423, 32
      %v479 = vpop.permute.xlu0 %478
      %481 = vrot.lane.b32.xlu0 %v423, 16
      %v482 = vpop.permute.xlu0 %481
      %485 = vrot.lane.b32.xlu0 %v424, 112
      %v486 = vpop.permute.xlu0 %485
      %488 = vrot.lane.b32.xlu0 %v424, 96
      %v489 = vpop.permute.xlu0 %488
      %491 = vrot.lane.b32.xlu0 %v424, 80
      %v492 = vpop.permute.xlu0 %491
      %494 = vrot.lane.b32.xlu0 %v424, 64
      %v495 = vpop.permute.xlu0 %494
      %497 = vrot.lane.b32.xlu0 %v424, 48
      %v498 = vpop.permute.xlu0 %497
      %500 = vrot.lane.b32.xlu0 %v424, 32
      %v501 = vpop.permute.xlu0 %500
      %503 = vrot.lane.b32.xlu0 %v424, 16
      %v504 = vpop.permute.xlu0 %503
      %v506 = vcombine.low %v423, %v467
      %v508 = vunpack.c.l.s4 1983009808
      %v509 = vunpack.c.0.s8 %v508
      %v510 = vlaneseq
      %v511 = vshrl.u32 %v510, 7
      %v512 = vsub.s32 %v509, %v511
      %v513 = vrot.slane %v506, %v512
      %v514 = vcombine.low %v464, %v470
      %v516 = vunpack.c.l.s4 1983009808
      %v517 = vunpack.c.0.s8 %v516
      %v518 = vlaneseq
      %v519 = vshrl.u32 %v518, 7
      %v520 = vsub.s32 %v517, %v519
      %v521 = vrot.slane %v514, %v520
      %v522 = vcombine.low %v473, %v479
      %v524 = vunpack.c.l.s4 1983009808
      %v525 = vunpack.c.0.s8 %v524
      %v526 = vlaneseq
      %v527 = vshrl.u32 %v526, 7
      %v528 = vsub.s32 %v525, %v527
      %v529 = vrot.slane %v522, %v528
      %v530 = vcombine.low %v476, %v482
      %v532 = vunpack.c.l.s4 1983009808
      %v533 = vunpack.c.0.s8 %v532
      %v534 = vlaneseq
      %v535 = vshrl.u32 %v534, 7
      %v536 = vsub.s32 %v533, %v535
      %v537 = vrot.slane %v530, %v536
      %v538 = vcombine.low %v513, %v521
      %v539 = vcombine.high %v513, %v521
      %v541 = vunpack.c.l.s4 1934713408
      %v542 = vunpack.c.0.s8 %v541
      %v543 = vlaneseq
      %v544 = vshrl.u32 %v543, 7
      %v545 = vsub.s32 %v542, %v544
      %v546 = vrot.slane %v538, %v545
      %v548 = vunpack.c.l.s4 1934713408
      %v549 = vunpack.c.0.s8 %v548
      %v550 = vlaneseq
      %v551 = vshrl.u32 %v550, 7
      %v552 = vsub.s32 %v549, %v551
      %v553 = vrot.slane %v539, %v552
      %v554 = vcombine.low %v529, %v537
      %v555 = vcombine.high %v529, %v537
      %v557 = vunpack.c.l.s4 1934713408
      %v558 = vunpack.c.0.s8 %v557
      %v559 = vlaneseq
      %v560 = vshrl.u32 %v559, 7
      %v561 = vsub.s32 %v558, %v560
      %v562 = vrot.slane %v554, %v561
      %v564 = vunpack.c.l.s4 1934713408
      %v565 = vunpack.c.0.s8 %v564
      %v566 = vlaneseq
      %v567 = vshrl.u32 %v566, 7
      %v568 = vsub.s32 %v565, %v567
      %v569 = vrot.slane %v555, %v568
      %v570 = vcombine.low %v546, %v562
      %v571 = vcombine.high %v546, %v562
      %v572 = vcombine.low %v553, %v569
      %v573 = vcombine.high %v553, %v569
      %v574 = vcombine.low %v424, %v489
      %v576 = vunpack.c.l.s4 1983009808
      %v577 = vunpack.c.0.s8 %v576
      %v578 = vlaneseq
      %v579 = vshrl.u32 %v578, 7
      %v580 = vsub.s32 %v577, %v579
      %v581 = vrot.slane %v574, %v580
      %v582 = vcombine.low %v486, %v492
      %v584 = vunpack.c.l.s4 1983009808
      %v585 = vunpack.c.0.s8 %v584
      %v586 = vlaneseq
      %v587 = vshrl.u32 %v586, 7
      %v588 = vsub.s32 %v585, %v587
      %v589 = vrot.slane %v582, %v588
      %v590 = vcombine.low %v495, %v501
      %v592 = vunpack.c.l.s4 1983009808
      %v593 = vunpack.c.0.s8 %v592
      %v594 = vlaneseq
      %v595 = vshrl.u32 %v594, 7
      %v596 = vsub.s32 %v593, %v595
      %v597 = vrot.slane %v590, %v596
      %v598 = vcombine.low %v498, %v504
      %v600 = vunpack.c.l.s4 1983009808
      %v601 = vunpack.c.0.s8 %v600
      %v602 = vlaneseq
      %v603 = vshrl.u32 %v602, 7
      %v604 = vsub.s32 %v601, %v603
      %v605 = vrot.slane %v598, %v604
      %v606 = vcombine.low %v581, %v589
      %v607 = vcombine.high %v581, %v589
      %v609 = vunpack.c.l.s4 1934713408
      %v610 = vunpack.c.0.s8 %v609
      %v611 = vlaneseq
      %v612 = vshrl.u32 %v611, 7
      %v613 = vsub.s32 %v610, %v612
      %v614 = vrot.slane %v606, %v613
      %v616 = vunpack.c.l.s4 1934713408
      %v617 = vunpack.c.0.s8 %v616
      %v618 = vlaneseq
      %v619 = vshrl.u32 %v618, 7
      %v620 = vsub.s32 %v617, %v619
      %v621 = vrot.slane %v607, %v620
      %v622 = vcombine.low %v597, %v605
      %v623 = vcombine.high %v597, %v605
      %v625 = vunpack.c.l.s4 1934713408
      %v626 = vunpack.c.0.s8 %v625
      %v627 = vlaneseq
      %v628 = vshrl.u32 %v627, 7
      %v629 = vsub.s32 %v626, %v628
      %v630 = vrot.slane %v622, %v629
      %v632 = vunpack.c.l.s4 1934713408
      %v633 = vunpack.c.0.s8 %v632
      %v634 = vlaneseq
      %v635 = vshrl.u32 %v634, 7
      %v636 = vsub.s32 %v633, %v635
      %v637 = vrot.slane %v623, %v636
      %v638 = vcombine.low %v614, %v630
      %v639 = vcombine.high %v614, %v630
      %v640 = vcombine.low %v621, %v637
      %v641 = vcombine.high %v621, %v637
      %650 = vrot.lane.b32.xlu0 %v570, 1
      %v651 = vpop.permute.xlu0 %650
      %652 = vrot.lane.b32.xlu0 %v638, 1
      %v653 = vpop.permute.xlu0 %652
      %654 = vrot.lane.b32.xlu0 %v571, 1
      %v655 = vpop.permute.xlu0 %654
      %656 = vrot.lane.b32.xlu0 %v639, 1
      %v657 = vpop.permute.xlu0 %656
      %658 = vrot.lane.b32.xlu0 %v572, 1
      %v659 = vpop.permute.xlu0 %658
      %660 = vrot.lane.b32.xlu0 %v640, 1
      %v661 = vpop.permute.xlu0 %660
      %662 = vrot.lane.b32.xlu0 %v573, 1
      %v663 = vpop.permute.xlu0 %662
      %664 = vrot.lane.b32.xlu0 %v641, 1
      %v665 = vpop.permute.xlu0 %664
      %vm674 = vcmask 138248
      %675 = vst.msk [vmem:[#allocation2 + $0x1] sm:$0xff] %vm674, %v651
      %676 = vst.msk [vmem:[#allocation2 + $0x9] sm:$0xff] %vm674, %v653
      %677 = vst.msk [vmem:[#allocation2 + $0x19] sm:$0xff] %vm674, %v655
      %678 = vst.msk [vmem:[#allocation2 + $0x21] sm:$0xff] %vm674, %v657
      %679 = vst.msk [vmem:[#allocation2 + $0x31] sm:$0xff] %vm674, %v659
      %680 = vst.msk [vmem:[#allocation2 + $0x39] sm:$0xff] %vm674, %v661
      %681 = vst.msk [vmem:[#allocation2 + $0x49] sm:$0xff] %vm674, %v663
      %682 = vst.msk [vmem:[#allocation2 + $0x51] sm:$0xff] %vm674, %v665
      %v683 = vld [vmem:[#allocation2] sm:$0xff]
      %v684 = vld [vmem:[#allocation2 + $0x8] sm:$0xff]
      %v685 = vld [vmem:[#allocation2 + $0x18] sm:$0xff]
      %v686 = vld [vmem:[#allocation2 + $0x20] sm:$0xff]
      %v687 = vld [vmem:[#allocation2 + $0x30] sm:$0xff]
      %v688 = vld [vmem:[#allocation2 + $0x38] sm:$0xff]
      %v689 = vld [vmem:[#allocation2 + $0x48] sm:$0xff]
      %v690 = vld [vmem:[#allocation2 + $0x50] sm:$0xff]
      %v691 = vcombine.low %v683, %v687
      %v692 = vcombine.high %v683, %v687
      %v694 = vunpack.c.l.s4 1983009808
      %v695 = vunpack.c.0.s8 %v694
      %v696 = vlaneseq
      %v697 = vshrl.u32 %v696, 7
      %v698 = vsub.s32 %v695, %v697
      %v699 = vrot.slane %v691, %v698
      %v701 = vunpack.c.l.s4 1983009808
      %v702 = vunpack.c.0.s8 %v701
      %v703 = vlaneseq
      %v704 = vshrl.u32 %v703, 7
      %v705 = vsub.s32 %v702, %v704
      %v706 = vrot.slane %v692, %v705
      %v707 = vcombine.low %v685, %v689
      %v708 = vcombine.high %v685, %v689
      %v710 = vunpack.c.l.s4 1983009808
      %v711 = vunpack.c.0.s8 %v710
      %v712 = vlaneseq
      %v713 = vshrl.u32 %v712, 7
      %v714 = vsub.s32 %v711, %v713
      %v715 = vrot.slane %v707, %v714
      %v717 = vunpack.c.l.s4 1983009808
      %v718 = vunpack.c.0.s8 %v717
      %v719 = vlaneseq
      %v720 = vshrl.u32 %v719, 7
      %v721 = vsub.s32 %v718, %v720
      %v722 = vrot.slane %v708, %v721
      %v723 = vcombine.low %v699, %v715
      %v724 = vcombine.high %v699, %v715
      %v726 = vunpack.c.l.s4 1934713408
      %v727 = vunpack.c.0.s8 %v726
      %v728 = vlaneseq
      %v729 = vshrl.u32 %v728, 7
      %v730 = vsub.s32 %v727, %v729
      %v731 = vrot.slane %v723, %v730
      %v733 = vunpack.c.l.s4 1934713408
      %v734 = vunpack.c.0.s8 %v733
      %v735 = vlaneseq
      %v736 = vshrl.u32 %v735, 7
      %v737 = vsub.s32 %v734, %v736
      %v738 = vrot.slane %v724, %v737
      %v739 = vcombine.low %v706, %v722
      %v740 = vcombine.high %v706, %v722
      %v742 = vunpack.c.l.s4 1934713408
      %v743 = vunpack.c.0.s8 %v742
      %v744 = vlaneseq
      %v745 = vshrl.u32 %v744, 7
      %v746 = vsub.s32 %v743, %v745
      %v747 = vrot.slane %v739, %v746
      %v749 = vunpack.c.l.s4 1934713408
      %v750 = vunpack.c.0.s8 %v749
      %v751 = vlaneseq
      %v752 = vshrl.u32 %v751, 7
      %v753 = vsub.s32 %v750, %v752
      %v754 = vrot.slane %v740, %v753
      %v755 = vcombine.high %v731, 0.0
      %v756 = vcombine.high %v738, 0.0
      %v757 = vcombine.high %v747, 0.0
      %v758 = vcombine.high %v754, 0.0
      %v759 = vcombine.low %v684, %v688
      %v760 = vcombine.high %v684, %v688
      %v762 = vunpack.c.l.s4 1983009808
      %v763 = vunpack.c.0.s8 %v762
      %v764 = vlaneseq
      %v765 = vshrl.u32 %v764, 7
      %v766 = vsub.s32 %v763, %v765
      %v767 = vrot.slane %v759, %v766
      %v769 = vunpack.c.l.s4 1983009808
      %v770 = vunpack.c.0.s8 %v769
      %v771 = vlaneseq
      %v772 = vshrl.u32 %v771, 7
      %v773 = vsub.s32 %v770, %v772
      %v774 = vrot.slane %v760, %v773
      %v775 = vcombine.low %v686, %v690
      %v776 = vcombine.high %v686, %v690
      %v778 = vunpack.c.l.s4 1983009808
      %v779 = vunpack.c.0.s8 %v778
      %v780 = vlaneseq
      %v781 = vshrl.u32 %v780, 7
      %v782 = vsub.s32 %v779, %v781
      %v783 = vrot.slane %v775, %v782
      %v785 = vunpack.c.l.s4 1983009808
      %v786 = vunpack.c.0.s8 %v785
      %v787 = vlaneseq
      %v788 = vshrl.u32 %v787, 7
      %v789 = vsub.s32 %v786, %v788
      %v790 = vrot.slane %v776, %v789
      %v791 = vcombine.low %v767, %v783
      %v792 = vcombine.high %v767, %v783
      %v794 = vunpack.c.l.s4 1934713408
      %v795 = vunpack.c.0.s8 %v794
      %v796 = vlaneseq
      %v797 = vshrl.u32 %v796, 7
      %v798 = vsub.s32 %v795, %v797
      %v799 = vrot.slane %v791, %v798
      %v801 = vunpack.c.l.s4 1934713408
      %v802 = vunpack.c.0.s8 %v801
      %v803 = vlaneseq
      %v804 = vshrl.u32 %v803, 7
      %v805 = vsub.s32 %v802, %v804
      %v806 = vrot.slane %v792, %v805
      %v807 = vcombine.low %v774, %v790
      %v808 = vcombine.high %v774, %v790
      %v810 = vunpack.c.l.s4 1934713408
      %v811 = vunpack.c.0.s8 %v810
      %v812 = vlaneseq
      %v813 = vshrl.u32 %v812, 7
      %v814 = vsub.s32 %v811, %v813
      %v815 = vrot.slane %v807, %v814
      %v817 = vunpack.c.l.s4 1934713408
      %v818 = vunpack.c.0.s8 %v817
      %v819 = vlaneseq
      %v820 = vshrl.u32 %v819, 7
      %v821 = vsub.s32 %v818, %v820
      %v822 = vrot.slane %v808, %v821
      %v823 = vcombine.high %v799, 0.0
      %v824 = vcombine.high %v806, 0.0
      %v825 = vcombine.high %v815, 0.0
      %v826 = vcombine.high %v822, 0.0
      %828 = vrot.lane.b32.xlu0 %v755, 16
      %v829 = vpop.permute.xlu0 %828
      %832 = vrot.lane.b32.xlu0 %v738, 32
      %v833 = vpop.permute.xlu0 %832
      %836 = vrot.lane.b32.xlu0 %v756, 48
      %v837 = vpop.permute.xlu0 %836
      %840 = vrot.lane.b32.xlu0 %v747, 64
      %v841 = vpop.permute.xlu0 %840
      %844 = vrot.lane.b32.xlu0 %v757, 80
      %v845 = vpop.permute.xlu0 %844
      %848 = vrot.lane.b32.xlu0 %v754, 96
      %v849 = vpop.permute.xlu0 %848
      %852 = vrot.lane.b32.xlu0 %v758, 112
      %v853 = vpop.permute.xlu0 %852
      %856 = vrot.lane.b32.xlu0 %v823, 16
      %v857 = vpop.permute.xlu0 %856
      %860 = vrot.lane.b32.xlu0 %v806, 32
      %v861 = vpop.permute.xlu0 %860
      %864 = vrot.lane.b32.xlu0 %v824, 48
      %v865 = vpop.permute.xlu0 %864
      %868 = vrot.lane.b32.xlu0 %v815, 64
      %v869 = vpop.permute.xlu0 %868
      %872 = vrot.lane.b32.xlu0 %v825, 80
      %v873 = vpop.permute.xlu0 %872
      %876 = vrot.lane.b32.xlu0 %v822, 96
      %v877 = vpop.permute.xlu0 %876
      %880 = vrot.lane.b32.xlu0 %v826, 112
      %v881 = vpop.permute.xlu0 %880
      %vm883 = vcmask 130048
      %v884 = vsel %vm883, %v731, %v829
      %vm885 = vcmask 261120
      %v886 = vsel %vm885, %v884, %v833
      %vm887 = vcmask 392192
      %v888 = vsel %vm887, %v886, %v837
      %vm889 = vcmask 523264
      %v890 = vsel %vm889, %v888, %v841
      %vm891 = vcmask 654336
      %v892 = vsel %vm891, %v890, %v845
      %vm893 = vcmask 785408
      %v894 = vsel %vm893, %v892, %v849
      %vm895 = vcmask 916480
      %v896 = vsel %vm895, %v894, %v853
      %v897 = vsel %vm883, %v799, %v857
      %v898 = vsel %vm885, %v897, %v861
      %v899 = vsel %vm887, %v898, %v865
      %v900 = vsel %vm889, %v899, %v869
      %v901 = vsel %vm891, %v900, %v873
      %v902 = vsel %vm893, %v901, %v877
      %v903 = vsel %vm895, %v902, %v881
      %904 = vst [vmem:[#allocation3] sm:$0xf] %v896
      %905 = vst [vmem:[#allocation3 + $0x8] sm:$0xf] %v903
      %v906 = vld [vmem:[#allocation2] sm:$0xff]
      %v907 = vld [vmem:[#allocation2 + $0x8] sm:$0xff]
      %v908 = vld [vmem:[#allocation2 + $0x18] sm:$0xff]
      %v909 = vld [vmem:[#allocation2 + $0x20] sm:$0xff]
      %v910 = vld [vmem:[#allocation2 + $0x30] sm:$0xff]
      %v911 = vld [vmem:[#allocation2 + $0x38] sm:$0xff]
      %v912 = vld [vmem:[#allocation2 + $0x48] sm:$0xff]
      %v913 = vld [vmem:[#allocation2 + $0x50] sm:$0xff]
      %922 = vrot.lane.b32.xlu0 %v906, 127
      %v923 = vpop.permute.xlu0 %922
      %924 = vrot.lane.b32.xlu0 %v907, 127
      %v925 = vpop.permute.xlu0 %924
      %926 = vrot.lane.b32.xlu0 %v908, 127
      %v927 = vpop.permute.xlu0 %926
      %928 = vrot.lane.b32.xlu0 %v909, 127
      %v929 = vpop.permute.xlu0 %928
      %930 = vrot.lane.b32.xlu0 %v910, 127
      %v931 = vpop.permute.xlu0 %930
      %932 = vrot.lane.b32.xlu0 %v911, 127
      %v933 = vpop.permute.xlu0 %932
      %934 = vrot.lane.b32.xlu0 %v912, 127
      %v935 = vpop.permute.xlu0 %934
      %936 = vrot.lane.b32.xlu0 %v913, 127
      %v937 = vpop.permute.xlu0 %936
      %v946 = vcombine.low %v923, %v931
      %v947 = vcombine.high %v923, %v931
      %v949 = vunpack.c.l.s4 1983009808
      %v950 = vunpack.c.0.s8 %v949
      %v951 = vlaneseq
      %v952 = vshrl.u32 %v951, 7
      %v953 = vsub.s32 %v950, %v952
      %v954 = vrot.slane %v946, %v953
      %v956 = vunpack.c.l.s4 1983009808
      %v957 = vunpack.c.0.s8 %v956
      %v958 = vlaneseq
      %v959 = vshrl.u32 %v958, 7
      %v960 = vsub.s32 %v957, %v959
      %v961 = vrot.slane %v947, %v960
      %v962 = vcombine.low %v927, %v935
      %v963 = vcombine.high %v927, %v935
      %v965 = vunpack.c.l.s4 1983009808
      %v966 = vunpack.c.0.s8 %v965
      %v967 = vlaneseq
      %v968 = vshrl.u32 %v967, 7
      %v969 = vsub.s32 %v966, %v968
      %v970 = vrot.slane %v962, %v969
      %v972 = vunpack.c.l.s4 1983009808
      %v973 = vunpack.c.0.s8 %v972
      %v974 = vlaneseq
      %v975 = vshrl.u32 %v974, 7
      %v976 = vsub.s32 %v973, %v975
      %v977 = vrot.slane %v963, %v976
      %v978 = vcombine.low %v954, %v970
      %v979 = vcombine.high %v954, %v970
      %v981 = vunpack.c.l.s4 1934713408
      %v982 = vunpack.c.0.s8 %v981
      %v983 = vlaneseq
      %v984 = vshrl.u32 %v983, 7
      %v985 = vsub.s32 %v982, %v984
      %v986 = vrot.slane %v978, %v985
      %v988 = vunpack.c.l.s4 1934713408
      %v989 = vunpack.c.0.s8 %v988
      %v990 = vlaneseq
      %v991 = vshrl.u32 %v990, 7
      %v992 = vsub.s32 %v989, %v991
      %v993 = vrot.slane %v979, %v992
      %v994 = vcombine.low %v961, %v977
      %v995 = vcombine.high %v961, %v977
      %v997 = vunpack.c.l.s4 1934713408
      %v998 = vunpack.c.0.s8 %v997
      %v999 = vlaneseq
      %v1000 = vshrl.u32 %v999, 7
      %v1001 = vsub.s32 %v998, %v1000
      %v1002 = vrot.slane %v994, %v1001
      %v1004 = vunpack.c.l.s4 1934713408
      %v1005 = vunpack.c.0.s8 %v1004
      %v1006 = vlaneseq
      %v1007 = vshrl.u32 %v1006, 7
      %v1008 = vsub.s32 %v1005, %v1007
      %v1009 = vrot.slane %v995, %v1008
      %v1010 = vcombine.high %v986, 0.0
      %v1011 = vcombine.high %v993, 0.0
      %v1012 = vcombine.high %v1002, 0.0
      %v1013 = vcombine.high %v1009, 0.0
      %v1014 = vcombine.low %v925, %v933
      %v1015 = vcombine.high %v925, %v933
      %v1017 = vunpack.c.l.s4 1983009808
      %v1018 = vunpack.c.0.s8 %v1017
      %v1019 = vlaneseq
      %v1020 = vshrl.u32 %v1019, 7
      %v1021 = vsub.s32 %v1018, %v1020
      %v1022 = vrot.slane %v1014, %v1021
      %v1024 = vunpack.c.l.s4 1983009808
      %v1025 = vunpack.c.0.s8 %v1024
      %v1026 = vlaneseq
      %v1027 = vshrl.u32 %v1026, 7
      %v1028 = vsub.s32 %v1025, %v1027
      %v1029 = vrot.slane %v1015, %v1028
      %v1030 = vcombine.low %v929, %v937
      %v1031 = vcombine.high %v929, %v937
      %v1033 = vunpack.c.l.s4 1983009808
      %v1034 = vunpack.c.0.s8 %v1033
      %v1035 = vlaneseq
      %v1036 = vshrl.u32 %v1035, 7
      %v1037 = vsub.s32 %v1034, %v1036
      %v1038 = vrot.slane %v1030, %v1037
      %v1040 = vunpack.c.l.s4 1983009808
      %v1041 = vunpack.c.0.s8 %v1040
      %v1042 = vlaneseq
      %v1043 = vshrl.u32 %v1042, 7
      %v1044 = vsub.s32 %v1041, %v1043
      %v1045 = vrot.slane %v1031, %v1044
      %v1046 = vcombine.low %v1022, %v1038
      %v1047 = vcombine.high %v1022, %v1038
      %v1049 = vunpack.c.l.s4 1934713408
      %v1050 = vunpack.c.0.s8 %v1049
      %v1051 = vlaneseq
      %v1052 = vshrl.u32 %v1051, 7
      %v1053 = vsub.s32 %v1050, %v1052
      %v1054 = vrot.slane %v1046, %v1053
      %v1056 = vunpack.c.l.s4 1934713408
      %v1057 = vunpack.c.0.s8 %v1056
      %v1058 = vlaneseq
      %v1059 = vshrl.u32 %v1058, 7
      %v1060 = vsub.s32 %v1057, %v1059
      %v1061 = vrot.slane %v1047, %v1060
      %v1062 = vcombine.low %v1029, %v1045
      %v1063 = vcombine.high %v1029, %v1045
      %v1065 = vunpack.c.l.s4 1934713408
      %v1066 = vunpack.c.0.s8 %v1065
      %v1067 = vlaneseq
      %v1068 = vshrl.u32 %v1067, 7
      %v1069 = vsub.s32 %v1066, %v1068
      %v1070 = vrot.slane %v1062, %v1069
      %v1072 = vunpack.c.l.s4 1934713408
      %v1073 = vunpack.c.0.s8 %v1072
      %v1074 = vlaneseq
      %v1075 = vshrl.u32 %v1074, 7
      %v1076 = vsub.s32 %v1073, %v1075
      %v1077 = vrot.slane %v1063, %v1076
      %v1078 = vcombine.high %v1054, 0.0
      %v1079 = vcombine.high %v1061, 0.0
      %v1080 = vcombine.high %v1070, 0.0
      %v1081 = vcombine.high %v1077, 0.0
      %1083 = vrot.lane.b32.xlu0 %v1010, 16
      %v1084 = vpop.permute.xlu0 %1083
      %1087 = vrot.lane.b32.xlu0 %v993, 32
      %v1088 = vpop.permute.xlu0 %1087
      %1091 = vrot.lane.b32.xlu0 %v1011, 48
      %v1092 = vpop.permute.xlu0 %1091
      %1095 = vrot.lane.b32.xlu0 %v1002, 64
      %v1096 = vpop.permute.xlu0 %1095
      %1099 = vrot.lane.b32.xlu0 %v1012, 80
      %v1100 = vpop.permute.xlu0 %1099
      %1103 = vrot.lane.b32.xlu0 %v1009, 96
      %v1104 = vpop.permute.xlu0 %1103
      %1107 = vrot.lane.b32.xlu0 %v1013, 112
      %v1108 = vpop.permute.xlu0 %1107
      %1111 = vrot.lane.b32.xlu0 %v1078, 16
      %v1112 = vpop.permute.xlu0 %1111
      %1115 = vrot.lane.b32.xlu0 %v1061, 32
      %v1116 = vpop.permute.xlu0 %1115
      %1119 = vrot.lane.b32.xlu0 %v1079, 48
      %v1120 = vpop.permute.xlu0 %1119
      %1123 = vrot.lane.b32.xlu0 %v1070, 64
      %v1124 = vpop.permute.xlu0 %1123
      %1127 = vrot.lane.b32.xlu0 %v1080, 80
      %v1128 = vpop.permute.xlu0 %1127
      %1131 = vrot.lane.b32.xlu0 %v1077, 96
      %v1132 = vpop.permute.xlu0 %1131
      %1135 = vrot.lane.b32.xlu0 %v1081, 112
      %v1136 = vpop.permute.xlu0 %1135
      %v1138 = vsel %vm883, %v986, %v1084
      %v1139 = vsel %vm885, %v1138, %v1088
      %v1140 = vsel %vm887, %v1139, %v1092
      %v1141 = vsel %vm889, %v1140, %v1096
      %v1142 = vsel %vm891, %v1141, %v1100
      %v1143 = vsel %vm893, %v1142, %v1104
      %v1144 = vsel %vm895, %v1143, %v1108
      %v1145 = vsel %vm883, %v1054, %v1112
      %v1146 = vsel %vm885, %v1145, %v1116
      %v1147 = vsel %vm887, %v1146, %v1120
      %v1148 = vsel %vm889, %v1147, %v1124
      %v1149 = vsel %vm891, %v1148, %v1128
      %v1150 = vsel %vm893, %v1149, %v1132
      %v1151 = vsel %vm895, %v1150, %v1136
      %v1154 = vrot.slane %v1144, 4
      %v1155 = vrot.slane %v1151, 4
      %1158 = vst [vmem:[#allocation3] sm:$0xf0] %v1154
      %1159 = vst [vmem:[#allocation3 + $0x8] sm:$0xf0] %v1155
      %v1160 = vld [vmem:[#allocation2] sm:$0xff]
      %v1161 = vld [vmem:[#allocation2 + $0x8] sm:$0xff]
      %v1162 = vld [vmem:[#allocation2 + $0x18] sm:$0xff]
      %v1163 = vld [vmem:[#allocation2 + $0x20] sm:$0xff]
      %v1164 = vld [vmem:[#allocation2 + $0x30] sm:$0xff]
      %v1165 = vld [vmem:[#allocation2 + $0x38] sm:$0xff]
      %v1166 = vld [vmem:[#allocation2 + $0x48] sm:$0xff]
      %v1167 = vld [vmem:[#allocation2 + $0x50] sm:$0xff]
      %1176 = vrot.lane.b32.xlu0 %v1160, 126
      %v1177 = vpop.permute.xlu0 %1176
      %1178 = vrot.lane.b32.xlu0 %v1161, 126
      %v1179 = vpop.permute.xlu0 %1178
      %1180 = vrot.lane.b32.xlu0 %v1162, 126
      %v1181 = vpop.permute.xlu0 %1180
      %1182 = vrot.lane.b32.xlu0 %v1163, 126
      %v1183 = vpop.permute.xlu0 %1182
      %1184 = vrot.lane.b32.xlu0 %v1164, 126
      %v1185 = vpop.permute.xlu0 %1184
      %1186 = vrot.lane.b32.xlu0 %v1165, 126
      %v1187 = vpop.permute.xlu0 %1186
      %1188 = vrot.lane.b32.xlu0 %v1166, 126
      %v1189 = vpop.permute.xlu0 %1188
      %1190 = vrot.lane.b32.xlu0 %v1167, 126
      %v1191 = vpop.permute.xlu0 %1190
      %v1200 = vcombine.low %v1177, %v1185
      %v1201 = vcombine.high %v1177, %v1185
      %v1203 = vunpack.c.l.s4 1983009808
      %v1204 = vunpack.c.0.s8 %v1203
      %v1205 = vlaneseq
      %v1206 = vshrl.u32 %v1205, 7
      %v1207 = vsub.s32 %v1204, %v1206
      %v1208 = vrot.slane %v1200, %v1207
      %v1210 = vunpack.c.l.s4 1983009808
      %v1211 = vunpack.c.0.s8 %v1210
      %v1212 = vlaneseq
      %v1213 = vshrl.u32 %v1212, 7
      %v1214 = vsub.s32 %v1211, %v1213
      %v1215 = vrot.slane %v1201, %v1214
      %v1216 = vcombine.low %v1181, %v1189
      %v1217 = vcombine.high %v1181, %v1189
      %v1219 = vunpack.c.l.s4 1983009808
      %v1220 = vunpack.c.0.s8 %v1219
      %v1221 = vlaneseq
      %v1222 = vshrl.u32 %v1221, 7
      %v1223 = vsub.s32 %v1220, %v1222
      %v1224 = vrot.slane %v1216, %v1223
      %v1226 = vunpack.c.l.s4 1983009808
      %v1227 = vunpack.c.0.s8 %v1226
      %v1228 = vlaneseq
      %v1229 = vshrl.u32 %v1228, 7
      %v1230 = vsub.s32 %v1227, %v1229
      %v1231 = vrot.slane %v1217, %v1230
      %v1232 = vcombine.low %v1208, %v1224
      %v1233 = vcombine.high %v1208, %v1224
      %v1235 = vunpack.c.l.s4 1934713408
      %v1236 = vunpack.c.0.s8 %v1235
      %v1237 = vlaneseq
      %v1238 = vshrl.u32 %v1237, 7
      %v1239 = vsub.s32 %v1236, %v1238
      %v1240 = vrot.slane %v1232, %v1239
      %v1242 = vunpack.c.l.s4 1934713408
      %v1243 = vunpack.c.0.s8 %v1242
      %v1244 = vlaneseq
      %v1245 = vshrl.u32 %v1244, 7
      %v1246 = vsub.s32 %v1243, %v1245
      %v1247 = vrot.slane %v1233, %v1246
      %v1248 = vcombine.low %v1215, %v1231
      %v1249 = vcombine.high %v1215, %v1231
      %v1251 = vunpack.c.l.s4 1934713408
      %v1252 = vunpack.c.0.s8 %v1251
      %v1253 = vlaneseq
      %v1254 = vshrl.u32 %v1253, 7
      %v1255 = vsub.s32 %v1252, %v1254
      %v1256 = vrot.slane %v1248, %v1255
      %v1258 = vunpack.c.l.s4 1934713408
      %v1259 = vunpack.c.0.s8 %v1258
      %v1260 = vlaneseq
      %v1261 = vshrl.u32 %v1260, 7
      %v1262 = vsub.s32 %v1259, %v1261
      %v1263 = vrot.slane %v1249, %v1262
      %v1264 = vcombine.high %v1240, 0.0
      %v1265 = vcombine.high %v1247, 0.0
      %v1266 = vcombine.high %v1256, 0.0
      %v1267 = vcombine.high %v1263, 0.0
      %v1268 = vcombine.low %v1179, %v1187
      %v1269 = vcombine.high %v1179, %v1187
      %v1271 = vunpack.c.l.s4 1983009808
      %v1272 = vunpack.c.0.s8 %v1271
      %v1273 = vlaneseq
      %v1274 = vshrl.u32 %v1273, 7
      %v1275 = vsub.s32 %v1272, %v1274
      %v1276 = vrot.slane %v1268, %v1275
      %v1278 = vunpack.c.l.s4 1983009808
      %v1279 = vunpack.c.0.s8 %v1278
      %v1280 = vlaneseq
      %v1281 = vshrl.u32 %v1280, 7
      %v1282 = vsub.s32 %v1279, %v1281
      %v1283 = vrot.slane %v1269, %v1282
      %v1284 = vcombine.low %v1183, %v1191
      %v1285 = vcombine.high %v1183, %v1191
      %v1287 = vunpack.c.l.s4 1983009808
      %v1288 = vunpack.c.0.s8 %v1287
      %v1289 = vlaneseq
      %v1290 = vshrl.u32 %v1289, 7
      %v1291 = vsub.s32 %v1288, %v1290
      %v1292 = vrot.slane %v1284, %v1291
      %v1294 = vunpack.c.l.s4 1983009808
      %v1295 = vunpack.c.0.s8 %v1294
      %v1296 = vlaneseq
      %v1297 = vshrl.u32 %v1296, 7
      %v1298 = vsub.s32 %v1295, %v1297
      %v1299 = vrot.slane %v1285, %v1298
      %v1300 = vcombine.low %v1276, %v1292
      %v1301 = vcombine.high %v1276, %v1292
      %v1303 = vunpack.c.l.s4 1934713408
      %v1304 = vunpack.c.0.s8 %v1303
      %v1305 = vlaneseq
      %v1306 = vshrl.u32 %v1305, 7
      %v1307 = vsub.s32 %v1304, %v1306
      %v1308 = vrot.slane %v1300, %v1307
      %v1310 = vunpack.c.l.s4 1934713408
      %v1311 = vunpack.c.0.s8 %v1310
      %v1312 = vlaneseq
      %v1313 = vshrl.u32 %v1312, 7
      %v1314 = vsub.s32 %v1311, %v1313
      %v1315 = vrot.slane %v1301, %v1314
      %v1316 = vcombine.low %v1283, %v1299
      %v1317 = vcombine.high %v1283, %v1299
      %v1319 = vunpack.c.l.s4 1934713408
      %v1320 = vunpack.c.0.s8 %v1319
      %v1321 = vlaneseq
      %v1322 = vshrl.u32 %v1321, 7
      %v1323 = vsub.s32 %v1320, %v1322
      %v1324 = vrot.slane %v1316, %v1323
      %v1326 = vunpack.c.l.s4 1934713408
      %v1327 = vunpack.c.0.s8 %v1326
      %v1328 = vlaneseq
      %v1329 = vshrl.u32 %v1328, 7
      %v1330 = vsub.s32 %v1327, %v1329
      %v1331 = vrot.slane %v1317, %v1330
      %v1332 = vcombine.high %v1308, 0.0
      %v1333 = vcombine.high %v1315, 0.0
      %v1334 = vcombine.high %v1324, 0.0
      %v1335 = vcombine.high %v1331, 0.0
      %1337 = vrot.lane.b32.xlu0 %v1264, 16
      %v1338 = vpop.permute.xlu0 %1337
      %1341 = vrot.lane.b32.xlu0 %v1247, 32
      %v1342 = vpop.permute.xlu0 %1341
      %1345 = vrot.lane.b32.xlu0 %v1265, 48
      %v1346 = vpop.permute.xlu0 %1345
      %1349 = vrot.lane.b32.xlu0 %v1256, 64
      %v1350 = vpop.permute.xlu0 %1349
      %1353 = vrot.lane.b32.xlu0 %v1266, 80
      %v1354 = vpop.permute.xlu0 %1353
      %1357 = vrot.lane.b32.xlu0 %v1263, 96
      %v1358 = vpop.permute.xlu0 %1357
      %1361 = vrot.lane.b32.xlu0 %v1267, 112
      %v1362 = vpop.permute.xlu0 %1361
      %1365 = vrot.lane.b32.xlu0 %v1332, 16
      %v1366 = vpop.permute.xlu0 %1365
      %1369 = vrot.lane.b32.xlu0 %v1315, 32
      %v1370 = vpop.permute.xlu0 %1369
      %1373 = vrot.lane.b32.xlu0 %v1333, 48
      %v1374 = vpop.permute.xlu0 %1373
      %1377 = vrot.lane.b32.xlu0 %v1324, 64
      %v1378 = vpop.permute.xlu0 %1377
      %1381 = vrot.lane.b32.xlu0 %v1334, 80
      %v1382 = vpop.permute.xlu0 %1381
      %1385 = vrot.lane.b32.xlu0 %v1331, 96
      %v1386 = vpop.permute.xlu0 %1385
      %1389 = vrot.lane.b32.xlu0 %v1335, 112
      %v1390 = vpop.permute.xlu0 %1389
      %v1392 = vsel %vm883, %v1240, %v1338
      %v1393 = vsel %vm885, %v1392, %v1342
      %v1394 = vsel %vm887, %v1393, %v1346
      %v1395 = vsel %vm889, %v1394, %v1350
      %v1396 = vsel %vm891, %v1395, %v1354
      %v1397 = vsel %vm893, %v1396, %v1358
      %v1398 = vsel %vm895, %v1397, %v1362
      %v1399 = vsel %vm883, %v1308, %v1366
      %v1400 = vsel %vm885, %v1399, %v1370
      %v1401 = vsel %vm887, %v1400, %v1374
      %v1402 = vsel %vm889, %v1401, %v1378
      %v1403 = vsel %vm891, %v1402, %v1382
      %v1404 = vsel %vm893, %v1403, %v1386
      %v1405 = vsel %vm895, %v1404, %v1390
      %1406 = vst [vmem:[#allocation3 + $0x10] sm:$0xf] %v1398
      %1407 = vst [vmem:[#allocation3 + $0x18] sm:$0xf] %v1405
      %v1408 = vld [vmem:[#allocation2 + $0x1] sm:$0xff]
      %v1409 = vld [vmem:[#allocation2 + $0x9] sm:$0xff]
      %v1410 = vld [vmem:[#allocation2 + $0x19] sm:$0xff]
      %v1411 = vld [vmem:[#allocation2 + $0x21] sm:$0xff]
      %v1412 = vld [vmem:[#allocation2 + $0x31] sm:$0xff]
      %v1413 = vld [vmem:[#allocation2 + $0x39] sm:$0xff]
      %v1414 = vld [vmem:[#allocation2 + $0x49] sm:$0xff]
      %v1415 = vld [vmem:[#allocation2 + $0x51] sm:$0xff]
      %v1416 = vcombine.low %v1408, %v1412
      %v1417 = vcombine.high %v1408, %v1412
      %v1419 = vunpack.c.l.s4 1983009808
      %v1420 = vunpack.c.0.s8 %v1419
      %v1421 = vlaneseq
      %v1422 = vshrl.u32 %v1421, 7
      %v1423 = vsub.s32 %v1420, %v1422
      %v1424 = vrot.slane %v1416, %v1423
      %v1426 = vunpack.c.l.s4 1983009808
      %v1427 = vunpack.c.0.s8 %v1426
      %v1428 = vlaneseq
      %v1429 = vshrl.u32 %v1428, 7
      %v1430 = vsub.s32 %v1427, %v1429
      %v1431 = vrot.slane %v1417, %v1430
      %v1432 = vcombine.low %v1410, %v1414
      %v1433 = vcombine.high %v1410, %v1414
      %v1435 = vunpack.c.l.s4 1983009808
      %v1436 = vunpack.c.0.s8 %v1435
      %v1437 = vlaneseq
      %v1438 = vshrl.u32 %v1437, 7
      %v1439 = vsub.s32 %v1436, %v1438
      %v1440 = vrot.slane %v1432, %v1439
      %v1442 = vunpack.c.l.s4 1983009808
      %v1443 = vunpack.c.0.s8 %v1442
      %v1444 = vlaneseq
      %v1445 = vshrl.u32 %v1444, 7
      %v1446 = vsub.s32 %v1443, %v1445
      %v1447 = vrot.slane %v1433, %v1446
      %v1448 = vcombine.low %v1424, %v1440
      %v1449 = vcombine.high %v1424, %v1440
      %v1451 = vunpack.c.l.s4 1934713408
      %v1452 = vunpack.c.0.s8 %v1451
      %v1453 = vlaneseq
      %v1454 = vshrl.u32 %v1453, 7
      %v1455 = vsub.s32 %v1452, %v1454
      %v1456 = vrot.slane %v1448, %v1455
      %v1458 = vunpack.c.l.s4 1934713408
      %v1459 = vunpack.c.0.s8 %v1458
      %v1460 = vlaneseq
      %v1461 = vshrl.u32 %v1460, 7
      %v1462 = vsub.s32 %v1459, %v1461
      %v1463 = vrot.slane %v1449, %v1462
      %v1464 = vcombine.low %v1431, %v1447
      %v1465 = vcombine.high %v1431, %v1447
      %v1467 = vunpack.c.l.s4 1934713408
      %v1468 = vunpack.c.0.s8 %v1467
      %v1469 = vlaneseq
      %v1470 = vshrl.u32 %v1469, 7
      %v1471 = vsub.s32 %v1468, %v1470
      %v1472 = vrot.slane %v1464, %v1471
      %v1474 = vunpack.c.l.s4 1934713408
      %v1475 = vunpack.c.0.s8 %v1474
      %v1476 = vlaneseq
      %v1477 = vshrl.u32 %v1476, 7
      %v1478 = vsub.s32 %v1475, %v1477
      %v1479 = vrot.slane %v1465, %v1478
      %v1480 = vcombine.high %v1456, 0.0
      %v1481 = vcombine.high %v1463, 0.0
      %v1482 = vcombine.high %v1472, 0.0
      %v1483 = vcombine.high %v1479, 0.0
      %v1484 = vcombine.low %v1409, %v1413
      %v1485 = vcombine.high %v1409, %v1413
      %v1487 = vunpack.c.l.s4 1983009808
      %v1488 = vunpack.c.0.s8 %v1487
      %v1489 = vlaneseq
      %v1490 = vshrl.u32 %v1489, 7
      %v1491 = vsub.s32 %v1488, %v1490
      %v1492 = vrot.slane %v1484, %v1491
      %v1494 = vunpack.c.l.s4 1983009808
      %v1495 = vunpack.c.0.s8 %v1494
      %v1496 = vlaneseq
      %v1497 = vshrl.u32 %v1496, 7
      %v1498 = vsub.s32 %v1495, %v1497
      %v1499 = vrot.slane %v1485, %v1498
      %v1500 = vcombine.low %v1411, %v1415
      %v1501 = vcombine.high %v1411, %v1415
      %v1503 = vunpack.c.l.s4 1983009808
      %v1504 = vunpack.c.0.s8 %v1503
      %v1505 = vlaneseq
      %v1506 = vshrl.u32 %v1505, 7
      %v1507 = vsub.s32 %v1504, %v1506
      %v1508 = vrot.slane %v1500, %v1507
      %v1510 = vunpack.c.l.s4 1983009808
      %v1511 = vunpack.c.0.s8 %v1510
      %v1512 = vlaneseq
      %v1513 = vshrl.u32 %v1512, 7
      %v1514 = vsub.s32 %v1511, %v1513
      %v1515 = vrot.slane %v1501, %v1514
      %v1516 = vcombine.low %v1492, %v1508
      %v1517 = vcombine.high %v1492, %v1508
      %v1519 = vunpack.c.l.s4 1934713408
      %v1520 = vunpack.c.0.s8 %v1519
      %v1521 = vlaneseq
      %v1522 = vshrl.u32 %v1521, 7
      %v1523 = vsub.s32 %v1520, %v1522
      %v1524 = vrot.slane %v1516, %v1523
      %v1526 = vunpack.c.l.s4 1934713408
      %v1527 = vunpack.c.0.s8 %v1526
      %v1528 = vlaneseq
      %v1529 = vshrl.u32 %v1528, 7
      %v1530 = vsub.s32 %v1527, %v1529
      %v1531 = vrot.slane %v1517, %v1530
      %v1532 = vcombine.low %v1499, %v1515
      %v1533 = vcombine.high %v1499, %v1515
      %v1535 = vunpack.c.l.s4 1934713408
      %v1536 = vunpack.c.0.s8 %v1535
      %v1537 = vlaneseq
      %v1538 = vshrl.u32 %v1537, 7
      %v1539 = vsub.s32 %v1536, %v1538
      %v1540 = vrot.slane %v1532, %v1539
      %v1542 = vunpack.c.l.s4 1934713408
      %v1543 = vunpack.c.0.s8 %v1542
      %v1544 = vlaneseq
      %v1545 = vshrl.u32 %v1544, 7
      %v1546 = vsub.s32 %v1543, %v1545
      %v1547 = vrot.slane %v1533, %v1546
      %v1548 = vcombine.high %v1524, 0.0
      %v1549 = vcombine.high %v1531, 0.0
      %v1550 = vcombine.high %v1540, 0.0
      %v1551 = vcombine.high %v1547, 0.0
      %1553 = vrot.lane.b32.xlu0 %v1480, 16
      %v1554 = vpop.permute.xlu0 %1553
      %1557 = vrot.lane.b32.xlu0 %v1463, 32
      %v1558 = vpop.permute.xlu0 %1557
      %1561 = vrot.lane.b32.xlu0 %v1481, 48
      %v1562 = vpop.permute.xlu0 %1561
      %1565 = vrot.lane.b32.xlu0 %v1472, 64
      %v1566 = vpop.permute.xlu0 %1565
      %1569 = vrot.lane.b32.xlu0 %v1482, 80
      %v1570 = vpop.permute.xlu0 %1569
      %1573 = vrot.lane.b32.xlu0 %v1479, 96
      %v1574 = vpop.permute.xlu0 %1573
      %1577 = vrot.lane.b32.xlu0 %v1483, 112
      %v1578 = vpop.permute.xlu0 %1577
      %1581 = vrot.lane.b32.xlu0 %v1548, 16
      %v1582 = vpop.permute.xlu0 %1581
      %1585 = vrot.lane.b32.xlu0 %v1531, 32
      %v1586 = vpop.permute.xlu0 %1585
      %1589 = vrot.lane.b32.xlu0 %v1549, 48
      %v1590 = vpop.permute.xlu0 %1589
      %1593 = vrot.lane.b32.xlu0 %v1540, 64
      %v1594 = vpop.permute.xlu0 %1593
      %1597 = vrot.lane.b32.xlu0 %v1550, 80
      %v1598 = vpop.permute.xlu0 %1597
      %1601 = vrot.lane.b32.xlu0 %v1547, 96
      %v1602 = vpop.permute.xlu0 %1601
      %1605 = vrot.lane.b32.xlu0 %v1551, 112
      %v1606 = vpop.permute.xlu0 %1605
      %v1608 = vsel %vm883, %v1456, %v1554
      %v1609 = vsel %vm885, %v1608, %v1558
      %v1610 = vsel %vm887, %v1609, %v1562
      %v1611 = vsel %vm889, %v1610, %v1566
      %v1612 = vsel %vm891, %v1611, %v1570
      %v1613 = vsel %vm893, %v1612, %v1574
      %v1614 = vsel %vm895, %v1613, %v1578
      %v1615 = vsel %vm883, %v1524, %v1582
      %v1616 = vsel %vm885, %v1615, %v1586
      %v1617 = vsel %vm887, %v1616, %v1590
      %v1618 = vsel %vm889, %v1617, %v1594
      %v1619 = vsel %vm891, %v1618, %v1598
      %v1620 = vsel %vm893, %v1619, %v1602
      %v1621 = vsel %vm895, %v1620, %v1606
      %v1624 = vrot.slane %v1614, 4
      %v1625 = vrot.slane %v1621, 4
      %1628 = vst [vmem:[#allocation3 + $0x10] sm:$0xf0] %v1624
      %1629 = vst [vmem:[#allocation3 + $0x18] sm:$0xf0] %v1625
      %v1630 = vld [vmem:[#allocation2 + $0x1] sm:$0xff]
      %v1631 = vld [vmem:[#allocation2 + $0x9] sm:$0xff]
      %v1632 = vld [vmem:[#allocation2 + $0x19] sm:$0xff]
      %v1633 = vld [vmem:[#allocation2 + $0x21] sm:$0xff]
      %v1634 = vld [vmem:[#allocation2 + $0x31] sm:$0xff]
      %v1635 = vld [vmem:[#allocation2 + $0x39] sm:$0xff]
      %v1636 = vld [vmem:[#allocation2 + $0x49] sm:$0xff]
      %v1637 = vld [vmem:[#allocation2 + $0x51] sm:$0xff]
      %1646 = vrot.lane.b32.xlu0 %v1630, 127
      %v1647 = vpop.permute.xlu0 %1646
      %1648 = vrot.lane.b32.xlu0 %v1631, 127
      %v1649 = vpop.permute.xlu0 %1648
      %1650 = vrot.lane.b32.xlu0 %v1632, 127
      %v1651 = vpop.permute.xlu0 %1650
      %1652 = vrot.lane.b32.xlu0 %v1633, 127
      %v1653 = vpop.permute.xlu0 %1652
      %1654 = vrot.lane.b32.xlu0 %v1634, 127
      %v1655 = vpop.permute.xlu0 %1654
      %1656 = vrot.lane.b32.xlu0 %v1635, 127
      %v1657 = vpop.permute.xlu0 %1656
      %1658 = vrot.lane.b32.xlu0 %v1636, 127
      %v1659 = vpop.permute.xlu0 %1658
      %1660 = vrot.lane.b32.xlu0 %v1637, 127
      %v1661 = vpop.permute.xlu0 %1660
      %v1670 = vcombine.low %v1647, %v1655
      %v1671 = vcombine.high %v1647, %v1655
      %v1673 = vunpack.c.l.s4 1983009808
      %v1674 = vunpack.c.0.s8 %v1673
      %v1675 = vlaneseq
      %v1676 = vshrl.u32 %v1675, 7
      %v1677 = vsub.s32 %v1674, %v1676
      %v1678 = vrot.slane %v1670, %v1677
      %v1680 = vunpack.c.l.s4 1983009808
      %v1681 = vunpack.c.0.s8 %v1680
      %v1682 = vlaneseq
      %v1683 = vshrl.u32 %v1682, 7
      %v1684 = vsub.s32 %v1681, %v1683
      %v1685 = vrot.slane %v1671, %v1684
      %v1686 = vcombine.low %v1651, %v1659
      %v1687 = vcombine.high %v1651, %v1659
      %v1689 = vunpack.c.l.s4 1983009808
      %v1690 = vunpack.c.0.s8 %v1689
      %v1691 = vlaneseq
      %v1692 = vshrl.u32 %v1691, 7
      %v1693 = vsub.s32 %v1690, %v1692
      %v1694 = vrot.slane %v1686, %v1693
      %v1696 = vunpack.c.l.s4 1983009808
      %v1697 = vunpack.c.0.s8 %v1696
      %v1698 = vlaneseq
      %v1699 = vshrl.u32 %v1698, 7
      %v1700 = vsub.s32 %v1697, %v1699
      %v1701 = vrot.slane %v1687, %v1700
      %v1702 = vcombine.low %v1678, %v1694
      %v1703 = vcombine.high %v1678, %v1694
      %v1705 = vunpack.c.l.s4 1934713408
      %v1706 = vunpack.c.0.s8 %v1705
      %v1707 = vlaneseq
      %v1708 = vshrl.u32 %v1707, 7
      %v1709 = vsub.s32 %v1706, %v1708
      %v1710 = vrot.slane %v1702, %v1709
      %v1712 = vunpack.c.l.s4 1934713408
      %v1713 = vunpack.c.0.s8 %v1712
      %v1714 = vlaneseq
      %v1715 = vshrl.u32 %v1714, 7
      %v1716 = vsub.s32 %v1713, %v1715
      %v1717 = vrot.slane %v1703, %v1716
      %v1718 = vcombine.low %v1685, %v1701
      %v1719 = vcombine.high %v1685, %v1701
      %v1721 = vunpack.c.l.s4 1934713408
      %v1722 = vunpack.c.0.s8 %v1721
      %v1723 = vlaneseq
      %v1724 = vshrl.u32 %v1723, 7
      %v1725 = vsub.s32 %v1722, %v1724
      %v1726 = vrot.slane %v1718, %v1725
      %v1728 = vunpack.c.l.s4 1934713408
      %v1729 = vunpack.c.0.s8 %v1728
      %v1730 = vlaneseq
      %v1731 = vshrl.u32 %v1730, 7
      %v1732 = vsub.s32 %v1729, %v1731
      %v1733 = vrot.slane %v1719, %v1732
      %v1734 = vcombine.high %v1710, 0.0
      %v1735 = vcombine.high %v1717, 0.0
      %v1736 = vcombine.high %v1726, 0.0
      %v1737 = vcombine.high %v1733, 0.0
      %v1738 = vcombine.low %v1649, %v1657
      %v1739 = vcombine.high %v1649, %v1657
      %v1741 = vunpack.c.l.s4 1983009808
      %v1742 = vunpack.c.0.s8 %v1741
      %v1743 = vlaneseq
      %v1744 = vshrl.u32 %v1743, 7
      %v1745 = vsub.s32 %v1742, %v1744
      %v1746 = vrot.slane %v1738, %v1745
      %v1748 = vunpack.c.l.s4 1983009808
      %v1749 = vunpack.c.0.s8 %v1748
      %v1750 = vlaneseq
      %v1751 = vshrl.u32 %v1750, 7
      %v1752 = vsub.s32 %v1749, %v1751
      %v1753 = vrot.slane %v1739, %v1752
      %v1754 = vcombine.low %v1653, %v1661
      %v1755 = vcombine.high %v1653, %v1661
      %v1757 = vunpack.c.l.s4 1983009808
      %v1758 = vunpack.c.0.s8 %v1757
      %v1759 = vlaneseq
      %v1760 = vshrl.u32 %v1759, 7
      %v1761 = vsub.s32 %v1758, %v1760
      %v1762 = vrot.slane %v1754, %v1761
      %v1764 = vunpack.c.l.s4 1983009808
      %v1765 = vunpack.c.0.s8 %v1764
      %v1766 = vlaneseq
      %v1767 = vshrl.u32 %v1766, 7
      %v1768 = vsub.s32 %v1765, %v1767
      %v1769 = vrot.slane %v1755, %v1768
      %v1770 = vcombine.low %v1746, %v1762
      %v1771 = vcombine.high %v1746, %v1762
      %v1773 = vunpack.c.l.s4 1934713408
      %v1774 = vunpack.c.0.s8 %v1773
      %v1775 = vlaneseq
      %v1776 = vshrl.u32 %v1775, 7
      %v1777 = vsub.s32 %v1774, %v1776
      %v1778 = vrot.slane %v1770, %v1777
      %v1780 = vunpack.c.l.s4 1934713408
      %v1781 = vunpack.c.0.s8 %v1780
      %v1782 = vlaneseq
      %v1783 = vshrl.u32 %v1782, 7
      %v1784 = vsub.s32 %v1781, %v1783
      %v1785 = vrot.slane %v1771, %v1784
      %v1786 = vcombine.low %v1753, %v1769
      %v1787 = vcombine.high %v1753, %v1769
      %v1789 = vunpack.c.l.s4 1934713408
      %v1790 = vunpack.c.0.s8 %v1789
      %v1791 = vlaneseq
      %v1792 = vshrl.u32 %v1791, 7
      %v1793 = vsub.s32 %v1790, %v1792
      %v1794 = vrot.slane %v1786, %v1793
      %v1796 = vunpack.c.l.s4 1934713408
      %v1797 = vunpack.c.0.s8 %v1796
      %v1798 = vlaneseq
      %v1799 = vshrl.u32 %v1798, 7
      %v1800 = vsub.s32 %v1797, %v1799
      %v1801 = vrot.slane %v1787, %v1800
      %v1802 = vcombine.high %v1778, 0.0
      %v1803 = vcombine.high %v1785, 0.0
      %v1804 = vcombine.high %v1794, 0.0
      %v1805 = vcombine.high %v1801, 0.0
      %1807 = vrot.lane.b32.xlu0 %v1734, 16
      %v1808 = vpop.permute.xlu0 %1807
      %1811 = vrot.lane.b32.xlu0 %v1717, 32
      %v1812 = vpop.permute.xlu0 %1811
      %1815 = vrot.lane.b32.xlu0 %v1735, 48
      %v1816 = vpop.permute.xlu0 %1815
      %1819 = vrot.lane.b32.xlu0 %v1726, 64
      %v1820 = vpop.permute.xlu0 %1819
      %1823 = vrot.lane.b32.xlu0 %v1736, 80
      %v1824 = vpop.permute.xlu0 %1823
      %1827 = vrot.lane.b32.xlu0 %v1733, 96
      %v1828 = vpop.permute.xlu0 %1827
      %1831 = vrot.lane.b32.xlu0 %v1737, 112
      %v1832 = vpop.permute.xlu0 %1831
      %1835 = vrot.lane.b32.xlu0 %v1802, 16
      %v1836 = vpop.permute.xlu0 %1835
      %1839 = vrot.lane.b32.xlu0 %v1785, 32
      %v1840 = vpop.permute.xlu0 %1839
      %1843 = vrot.lane.b32.xlu0 %v1803, 48
      %v1844 = vpop.permute.xlu0 %1843
      %1847 = vrot.lane.b32.xlu0 %v1794, 64
      %v1848 = vpop.permute.xlu0 %1847
      %1851 = vrot.lane.b32.xlu0 %v1804, 80
      %v1852 = vpop.permute.xlu0 %1851
      %1855 = vrot.lane.b32.xlu0 %v1801, 96
      %v1856 = vpop.permute.xlu0 %1855
      %1859 = vrot.lane.b32.xlu0 %v1805, 112
      %v1860 = vpop.permute.xlu0 %1859
      %v1862 = vsel %vm883, %v1710, %v1808
      %v1863 = vsel %vm885, %v1862, %v1812
      %v1864 = vsel %vm887, %v1863, %v1816
      %v1865 = vsel %vm889, %v1864, %v1820
      %v1866 = vsel %vm891, %v1865, %v1824
      %v1867 = vsel %vm893, %v1866, %v1828
      %v1868 = vsel %vm895, %v1867, %v1832
      %v1869 = vsel %vm883, %v1778, %v1836
      %v1870 = vsel %vm885, %v1869, %v1840
      %v1871 = vsel %vm887, %v1870, %v1844
      %v1872 = vsel %vm889, %v1871, %v1848
      %v1873 = vsel %vm891, %v1872, %v1852
      %v1874 = vsel %vm893, %v1873, %v1856
      %v1875 = vsel %vm895, %v1874, %v1860
      %1876 = vst [vmem:[#allocation3 + $0x20] sm:$0xf] %v1868
      %1877 = vst [vmem:[#allocation3 + $0x28] sm:$0xf] %v1875
      %v1878 = vld [vmem:[#allocation2 + $0x1] sm:$0xff]
      %v1879 = vld [vmem:[#allocation2 + $0x9] sm:$0xff]
      %v1880 = vld [vmem:[#allocation2 + $0x19] sm:$0xff]
      %v1881 = vld [vmem:[#allocation2 + $0x21] sm:$0xff]
      %v1882 = vld [vmem:[#allocation2 + $0x31] sm:$0xff]
      %v1883 = vld [vmem:[#allocation2 + $0x39] sm:$0xff]
      %v1884 = vld [vmem:[#allocation2 + $0x49] sm:$0xff]
      %v1885 = vld [vmem:[#allocation2 + $0x51] sm:$0xff]
      %1894 = vrot.lane.b32.xlu0 %v1878, 126
      %v1895 = vpop.permute.xlu0 %1894
      %1896 = vrot.lane.b32.xlu0 %v1879, 126
      %v1897 = vpop.permute.xlu0 %1896
      %1898 = vrot.lane.b32.xlu0 %v1880, 126
      %v1899 = vpop.permute.xlu0 %1898
      %1900 = vrot.lane.b32.xlu0 %v1881, 126
      %v1901 = vpop.permute.xlu0 %1900
      %1902 = vrot.lane.b32.xlu0 %v1882, 126
      %v1903 = vpop.permute.xlu0 %1902
      %1904 = vrot.lane.b32.xlu0 %v1883, 126
      %v1905 = vpop.permute.xlu0 %1904
      %1906 = vrot.lane.b32.xlu0 %v1884, 126
      %v1907 = vpop.permute.xlu0 %1906
      %1908 = vrot.lane.b32.xlu0 %v1885, 126
      %v1909 = vpop.permute.xlu0 %1908
      %v1918 = vcombine.low %v1895, %v1903
      %v1919 = vcombine.high %v1895, %v1903
      %v1921 = vunpack.c.l.s4 1983009808
      %v1922 = vunpack.c.0.s8 %v1921
      %v1923 = vlaneseq
      %v1924 = vshrl.u32 %v1923, 7
      %v1925 = vsub.s32 %v1922, %v1924
      %v1926 = vrot.slane %v1918, %v1925
      %v1928 = vunpack.c.l.s4 1983009808
      %v1929 = vunpack.c.0.s8 %v1928
      %v1930 = vlaneseq
      %v1931 = vshrl.u32 %v1930, 7
      %v1932 = vsub.s32 %v1929, %v1931
      %v1933 = vrot.slane %v1919, %v1932
      %v1934 = vcombine.low %v1899, %v1907
      %v1935 = vcombine.high %v1899, %v1907
      %v1937 = vunpack.c.l.s4 1983009808
      %v1938 = vunpack.c.0.s8 %v1937
      %v1939 = vlaneseq
      %v1940 = vshrl.u32 %v1939, 7
      %v1941 = vsub.s32 %v1938, %v1940
      %v1942 = vrot.slane %v1934, %v1941
      %v1944 = vunpack.c.l.s4 1983009808
      %v1945 = vunpack.c.0.s8 %v1944
      %v1946 = vlaneseq
      %v1947 = vshrl.u32 %v1946, 7
      %v1948 = vsub.s32 %v1945, %v1947
      %v1949 = vrot.slane %v1935, %v1948
      %v1950 = vcombine.low %v1926, %v1942
      %v1951 = vcombine.high %v1926, %v1942
      %v1953 = vunpack.c.l.s4 1934713408
      %v1954 = vunpack.c.0.s8 %v1953
      %v1955 = vlaneseq
      %v1956 = vshrl.u32 %v1955, 7
      %v1957 = vsub.s32 %v1954, %v1956
      %v1958 = vrot.slane %v1950, %v1957
      %v1960 = vunpack.c.l.s4 1934713408
      %v1961 = vunpack.c.0.s8 %v1960
      %v1962 = vlaneseq
      %v1963 = vshrl.u32 %v1962, 7
      %v1964 = vsub.s32 %v1961, %v1963
      %v1965 = vrot.slane %v1951, %v1964
      %v1966 = vcombine.low %v1933, %v1949
      %v1967 = vcombine.high %v1933, %v1949
      %v1969 = vunpack.c.l.s4 1934713408
      %v1970 = vunpack.c.0.s8 %v1969
      %v1971 = vlaneseq
      %v1972 = vshrl.u32 %v1971, 7
      %v1973 = vsub.s32 %v1970, %v1972
      %v1974 = vrot.slane %v1966, %v1973
      %v1976 = vunpack.c.l.s4 1934713408
      %v1977 = vunpack.c.0.s8 %v1976
      %v1978 = vlaneseq
      %v1979 = vshrl.u32 %v1978, 7
      %v1980 = vsub.s32 %v1977, %v1979
      %v1981 = vrot.slane %v1967, %v1980
      %v1982 = vcombine.high %v1958, 0.0
      %v1983 = vcombine.high %v1965, 0.0
      %v1984 = vcombine.high %v1974, 0.0
      %v1985 = vcombine.high %v1981, 0.0
      %v1986 = vcombine.low %v1897, %v1905
      %v1987 = vcombine.high %v1897, %v1905
      %v1989 = vunpack.c.l.s4 1983009808
      %v1990 = vunpack.c.0.s8 %v1989
      %v1991 = vlaneseq
      %v1992 = vshrl.u32 %v1991, 7
      %v1993 = vsub.s32 %v1990, %v1992
      %v1994 = vrot.slane %v1986, %v1993
      %v1996 = vunpack.c.l.s4 1983009808
      %v1997 = vunpack.c.0.s8 %v1996
      %v1998 = vlaneseq
      %v1999 = vshrl.u32 %v1998, 7
      %v2000 = vsub.s32 %v1997, %v1999
      %v2001 = vrot.slane %v1987, %v2000
      %v2002 = vcombine.low %v1901, %v1909
      %v2003 = vcombine.high %v1901, %v1909
      %v2005 = vunpack.c.l.s4 1983009808
      %v2006 = vunpack.c.0.s8 %v2005
      %v2007 = vlaneseq
      %v2008 = vshrl.u32 %v2007, 7
      %v2009 = vsub.s32 %v2006, %v2008
      %v2010 = vrot.slane %v2002, %v2009
      %v2012 = vunpack.c.l.s4 1983009808
      %v2013 = vunpack.c.0.s8 %v2012
      %v2014 = vlaneseq
      %v2015 = vshrl.u32 %v2014, 7
      %v2016 = vsub.s32 %v2013, %v2015
      %v2017 = vrot.slane %v2003, %v2016
      %v2018 = vcombine.low %v1994, %v2010
      %v2019 = vcombine.high %v1994, %v2010
      %v2021 = vunpack.c.l.s4 1934713408
      %v2022 = vunpack.c.0.s8 %v2021
      %v2023 = vlaneseq
      %v2024 = vshrl.u32 %v2023, 7
      %v2025 = vsub.s32 %v2022, %v2024
      %v2026 = vrot.slane %v2018, %v2025
      %v2028 = vunpack.c.l.s4 1934713408
      %v2029 = vunpack.c.0.s8 %v2028
      %v2030 = vlaneseq
      %v2031 = vshrl.u32 %v2030, 7
      %v2032 = vsub.s32 %v2029, %v2031
      %v2033 = vrot.slane %v2019, %v2032
      %v2034 = vcombine.low %v2001, %v2017
      %v2035 = vcombine.high %v2001, %v2017
      %v2037 = vunpack.c.l.s4 1934713408
      %v2038 = vunpack.c.0.s8 %v2037
      %v2039 = vlaneseq
      %v2040 = vshrl.u32 %v2039, 7
      %v2041 = vsub.s32 %v2038, %v2040
      %v2042 = vrot.slane %v2034, %v2041
      %v2044 = vunpack.c.l.s4 1934713408
      %v2045 = vunpack.c.0.s8 %v2044
      %v2046 = vlaneseq
      %v2047 = vshrl.u32 %v2046, 7
      %v2048 = vsub.s32 %v2045, %v2047
      %v2049 = vrot.slane %v2035, %v2048
      %v2050 = vcombine.high %v2026, 0.0
      %v2051 = vcombine.high %v2033, 0.0
      %v2052 = vcombine.high %v2042, 0.0
      %v2053 = vcombine.high %v2049, 0.0
      %2055 = vrot.lane.b32.xlu0 %v1982, 16
      %v2056 = vpop.permute.xlu0 %2055
      %2059 = vrot.lane.b32.xlu0 %v1965, 32
      %v2060 = vpop.permute.xlu0 %2059
      %2063 = vrot.lane.b32.xlu0 %v1983, 48
      %v2064 = vpop.permute.xlu0 %2063
      %2067 = vrot.lane.b32.xlu0 %v1974, 64
      %v2068 = vpop.permute.xlu0 %2067
      %2071 = vrot.lane.b32.xlu0 %v1984, 80
      %v2072 = vpop.permute.xlu0 %2071
      %2075 = vrot.lane.b32.xlu0 %v1981, 96
      %v2076 = vpop.permute.xlu0 %2075
      %2079 = vrot.lane.b32.xlu0 %v1985, 112
      %v2080 = vpop.permute.xlu0 %2079
      %2083 = vrot.lane.b32.xlu0 %v2050, 16
      %v2084 = vpop.permute.xlu0 %2083
      %2087 = vrot.lane.b32.xlu0 %v2033, 32
      %v2088 = vpop.permute.xlu0 %2087
      %2091 = vrot.lane.b32.xlu0 %v2051, 48
      %v2092 = vpop.permute.xlu0 %2091
      %2095 = vrot.lane.b32.xlu0 %v2042, 64
      %v2096 = vpop.permute.xlu0 %2095
      %2099 = vrot.lane.b32.xlu0 %v2052, 80
      %v2100 = vpop.permute.xlu0 %2099
      %2103 = vrot.lane.b32.xlu0 %v2049, 96
      %v2104 = vpop.permute.xlu0 %2103
      %2107 = vrot.lane.b32.xlu0 %v2053, 112
      %v2108 = vpop.permute.xlu0 %2107
      %v2110 = vsel %vm883, %v1958, %v2056
      %v2111 = vsel %vm885, %v2110, %v2060
      %v2112 = vsel %vm887, %v2111, %v2064
      %v2113 = vsel %vm889, %v2112, %v2068
      %v2114 = vsel %vm891, %v2113, %v2072
      %v2115 = vsel %vm893, %v2114, %v2076
      %v2116 = vsel %vm895, %v2115, %v2080
      %v2117 = vsel %vm883, %v2026, %v2084
      %v2118 = vsel %vm885, %v2117, %v2088
      %v2119 = vsel %vm887, %v2118, %v2092
      %v2120 = vsel %vm889, %v2119, %v2096
      %v2121 = vsel %vm891, %v2120, %v2100
      %v2122 = vsel %vm893, %v2121, %v2104
      %v2123 = vsel %vm895, %v2122, %v2108
      %v2126 = vrot.slane %v2116, 4
      %v2127 = vrot.slane %v2123, 4
      %2130 = vst [vmem:[#allocation3 + $0x20] sm:$0xf0] %v2126
      %2131 = vst [vmem:[#allocation3 + $0x28] sm:$0xf0] %v2127
      %v2132 = vld [vmem:[#allocation2 + $0x2] sm:$0xff]
      %v2133 = vld [vmem:[#allocation2 + $0xa] sm:$0xff]
      %v2134 = vld [vmem:[#allocation2 + $0x1a] sm:$0xff]
      %v2135 = vld [vmem:[#allocation2 + $0x22] sm:$0xff]
      %v2136 = vld [vmem:[#allocation2 + $0x32] sm:$0xff]
      %v2137 = vld [vmem:[#allocation2 + $0x3a] sm:$0xff]
      %v2138 = vld [vmem:[#allocation2 + $0x4a] sm:$0xff]
      %v2139 = vld [vmem:[#allocation2 + $0x52] sm:$0xff]
      %v2140 = vcombine.low %v2132, %v2136
      %v2141 = vcombine.high %v2132, %v2136
      %v2143 = vunpack.c.l.s4 1983009808
      %v2144 = vunpack.c.0.s8 %v2143
      %v2145 = vlaneseq
      %v2146 = vshrl.u32 %v2145, 7
      %v2147 = vsub.s32 %v2144, %v2146
      %v2148 = vrot.slane %v2140, %v2147
      %v2150 = vunpack.c.l.s4 1983009808
      %v2151 = vunpack.c.0.s8 %v2150
      %v2152 = vlaneseq
      %v2153 = vshrl.u32 %v2152, 7
      %v2154 = vsub.s32 %v2151, %v2153
      %v2155 = vrot.slane %v2141, %v2154
      %v2156 = vcombine.low %v2134, %v2138
      %v2157 = vcombine.high %v2134, %v2138
      %v2159 = vunpack.c.l.s4 1983009808
      %v2160 = vunpack.c.0.s8 %v2159
      %v2161 = vlaneseq
      %v2162 = vshrl.u32 %v2161, 7
      %v2163 = vsub.s32 %v2160, %v2162
      %v2164 = vrot.slane %v2156, %v2163
      %v2166 = vunpack.c.l.s4 1983009808
      %v2167 = vunpack.c.0.s8 %v2166
      %v2168 = vlaneseq
      %v2169 = vshrl.u32 %v2168, 7
      %v2170 = vsub.s32 %v2167, %v2169
      %v2171 = vrot.slane %v2157, %v2170
      %v2172 = vcombine.low %v2148, %v2164
      %v2173 = vcombine.high %v2148, %v2164
      %v2175 = vunpack.c.l.s4 1934713408
      %v2176 = vunpack.c.0.s8 %v2175
      %v2177 = vlaneseq
      %v2178 = vshrl.u32 %v2177, 7
      %v2179 = vsub.s32 %v2176, %v2178
      %v2180 = vrot.slane %v2172, %v2179
      %v2182 = vunpack.c.l.s4 1934713408
      %v2183 = vunpack.c.0.s8 %v2182
      %v2184 = vlaneseq
      %v2185 = vshrl.u32 %v2184, 7
      %v2186 = vsub.s32 %v2183, %v2185
      %v2187 = vrot.slane %v2173, %v2186
      %v2188 = vcombine.low %v2155, %v2171
      %v2189 = vcombine.high %v2155, %v2171
      %v2191 = vunpack.c.l.s4 1934713408
      %v2192 = vunpack.c.0.s8 %v2191
      %v2193 = vlaneseq
      %v2194 = vshrl.u32 %v2193, 7
      %v2195 = vsub.s32 %v2192, %v2194
      %v2196 = vrot.slane %v2188, %v2195
      %v2198 = vunpack.c.l.s4 1934713408
      %v2199 = vunpack.c.0.s8 %v2198
      %v2200 = vlaneseq
      %v2201 = vshrl.u32 %v2200, 7
      %v2202 = vsub.s32 %v2199, %v2201
      %v2203 = vrot.slane %v2189, %v2202
      %v2204 = vcombine.high %v2180, 0.0
      %v2205 = vcombine.high %v2187, 0.0
      %v2206 = vcombine.high %v2196, 0.0
      %v2207 = vcombine.high %v2203, 0.0
      %v2208 = vcombine.low %v2133, %v2137
      %v2209 = vcombine.high %v2133, %v2137
      %v2211 = vunpack.c.l.s4 1983009808
      %v2212 = vunpack.c.0.s8 %v2211
      %v2213 = vlaneseq
      %v2214 = vshrl.u32 %v2213, 7
      %v2215 = vsub.s32 %v2212, %v2214
      %v2216 = vrot.slane %v2208, %v2215
      %v2218 = vunpack.c.l.s4 1983009808
      %v2219 = vunpack.c.0.s8 %v2218
      %v2220 = vlaneseq
      %v2221 = vshrl.u32 %v2220, 7
      %v2222 = vsub.s32 %v2219, %v2221
      %v2223 = vrot.slane %v2209, %v2222
      %v2224 = vcombine.low %v2135, %v2139
      %v2225 = vcombine.high %v2135, %v2139
      %v2227 = vunpack.c.l.s4 1983009808
      %v2228 = vunpack.c.0.s8 %v2227
      %v2229 = vlaneseq
      %v2230 = vshrl.u32 %v2229, 7
      %v2231 = vsub.s32 %v2228, %v2230
      %v2232 = vrot.slane %v2224, %v2231
      %v2234 = vunpack.c.l.s4 1983009808
      %v2235 = vunpack.c.0.s8 %v2234
      %v2236 = vlaneseq
      %v2237 = vshrl.u32 %v2236, 7
      %v2238 = vsub.s32 %v2235, %v2237
      %v2239 = vrot.slane %v2225, %v2238
      %v2240 = vcombine.low %v2216, %v2232
      %v2241 = vcombine.high %v2216, %v2232
      %v2243 = vunpack.c.l.s4 1934713408
      %v2244 = vunpack.c.0.s8 %v2243
      %v2245 = vlaneseq
      %v2246 = vshrl.u32 %v2245, 7
      %v2247 = vsub.s32 %v2244, %v2246
      %v2248 = vrot.slane %v2240, %v2247
      %v2250 = vunpack.c.l.s4 1934713408
      %v2251 = vunpack.c.0.s8 %v2250
      %v2252 = vlaneseq
      %v2253 = vshrl.u32 %v2252, 7
      %v2254 = vsub.s32 %v2251, %v2253
      %v2255 = vrot.slane %v2241, %v2254
      %v2256 = vcombine.low %v2223, %v2239
      %v2257 = vcombine.high %v2223, %v2239
      %v2259 = vunpack.c.l.s4 1934713408
      %v2260 = vunpack.c.0.s8 %v2259
      %v2261 = vlaneseq
      %v2262 = vshrl.u32 %v2261, 7
      %v2263 = vsub.s32 %v2260, %v2262
      %v2264 = vrot.slane %v2256, %v2263
      %v2266 = vunpack.c.l.s4 1934713408
      %v2267 = vunpack.c.0.s8 %v2266
      %v2268 = vlaneseq
      %v2269 = vshrl.u32 %v2268, 7
      %v2270 = vsub.s32 %v2267, %v2269
      %v2271 = vrot.slane %v2257, %v2270
      %v2272 = vcombine.high %v2248, 0.0
      %v2273 = vcombine.high %v2255, 0.0
      %v2274 = vcombine.high %v2264, 0.0
      %v2275 = vcombine.high %v2271, 0.0
      %2277 = vrot.lane.b32.xlu0 %v2204, 16
      %v2278 = vpop.permute.xlu0 %2277
      %2281 = vrot.lane.b32.xlu0 %v2187, 32
      %v2282 = vpop.permute.xlu0 %2281
      %2285 = vrot.lane.b32.xlu0 %v2205, 48
      %v2286 = vpop.permute.xlu0 %2285
      %2289 = vrot.lane.b32.xlu0 %v2196, 64
      %v2290 = vpop.permute.xlu0 %2289
      %2293 = vrot.lane.b32.xlu0 %v2206, 80
      %v2294 = vpop.permute.xlu0 %2293
      %2297 = vrot.lane.b32.xlu0 %v2203, 96
      %v2298 = vpop.permute.xlu0 %2297
      %2301 = vrot.lane.b32.xlu0 %v2207, 112
      %v2302 = vpop.permute.xlu0 %2301
      %2305 = vrot.lane.b32.xlu0 %v2272, 16
      %v2306 = vpop.permute.xlu0 %2305
      %2309 = vrot.lane.b32.xlu0 %v2255, 32
      %v2310 = vpop.permute.xlu0 %2309
      %2313 = vrot.lane.b32.xlu0 %v2273, 48
      %v2314 = vpop.permute.xlu0 %2313
      %2317 = vrot.lane.b32.xlu0 %v2264, 64
      %v2318 = vpop.permute.xlu0 %2317
      %2321 = vrot.lane.b32.xlu0 %v2274, 80
      %v2322 = vpop.permute.xlu0 %2321
      %2325 = vrot.lane.b32.xlu0 %v2271, 96
      %v2326 = vpop.permute.xlu0 %2325
      %2329 = vrot.lane.b32.xlu0 %v2275, 112
      %v2330 = vpop.permute.xlu0 %2329
      %v2332 = vsel %vm883, %v2180, %v2278
      %v2333 = vsel %vm885, %v2332, %v2282
      %v2334 = vsel %vm887, %v2333, %v2286
      %v2335 = vsel %vm889, %v2334, %v2290
      %v2336 = vsel %vm891, %v2335, %v2294
      %v2337 = vsel %vm893, %v2336, %v2298
      %v2338 = vsel %vm895, %v2337, %v2302
      %v2339 = vsel %vm883, %v2248, %v2306
      %v2340 = vsel %vm885, %v2339, %v2310
      %v2341 = vsel %vm887, %v2340, %v2314
      %v2342 = vsel %vm889, %v2341, %v2318
      %v2343 = vsel %vm891, %v2342, %v2322
      %v2344 = vsel %vm893, %v2343, %v2326
      %v2345 = vsel %vm895, %v2344, %v2330
      %2346 = vst [vmem:[#allocation3 + $0x30] sm:$0xf] %v2338
      %2347 = vst [vmem:[#allocation3 + $0x38] sm:$0xf] %v2345
      %v2348 = vld [vmem:[#allocation2 + $0x2] sm:$0xff]
      %v2349 = vld [vmem:[#allocation2 + $0xa] sm:$0xff]
      %v2350 = vld [vmem:[#allocation2 + $0x1a] sm:$0xff]
      %v2351 = vld [vmem:[#allocation2 + $0x22] sm:$0xff]
      %v2352 = vld [vmem:[#allocation2 + $0x32] sm:$0xff]
      %v2353 = vld [vmem:[#allocation2 + $0x3a] sm:$0xff]
      %v2354 = vld [vmem:[#allocation2 + $0x4a] sm:$0xff]
      %v2355 = vld [vmem:[#allocation2 + $0x52] sm:$0xff]
      %2364 = vrot.lane.b32.xlu0 %v2348, 127
      %v2365 = vpop.permute.xlu0 %2364
      %2366 = vrot.lane.b32.xlu0 %v2349, 127
      %v2367 = vpop.permute.xlu0 %2366
      %2368 = vrot.lane.b32.xlu0 %v2350, 127
      %v2369 = vpop.permute.xlu0 %2368
      %2370 = vrot.lane.b32.xlu0 %v2351, 127
      %v2371 = vpop.permute.xlu0 %2370
      %2372 = vrot.lane.b32.xlu0 %v2352, 127
      %v2373 = vpop.permute.xlu0 %2372
      %2374 = vrot.lane.b32.xlu0 %v2353, 127
      %v2375 = vpop.permute.xlu0 %2374
      %2376 = vrot.lane.b32.xlu0 %v2354, 127
      %v2377 = vpop.permute.xlu0 %2376
      %2378 = vrot.lane.b32.xlu0 %v2355, 127
      %v2379 = vpop.permute.xlu0 %2378
      %v2388 = vcombine.low %v2365, %v2373
      %v2389 = vcombine.high %v2365, %v2373
      %v2391 = vunpack.c.l.s4 1983009808
      %v2392 = vunpack.c.0.s8 %v2391
      %v2393 = vlaneseq
      %v2394 = vshrl.u32 %v2393, 7
      %v2395 = vsub.s32 %v2392, %v2394
      %v2396 = vrot.slane %v2388, %v2395
      %v2398 = vunpack.c.l.s4 1983009808
      %v2399 = vunpack.c.0.s8 %v2398
      %v2400 = vlaneseq
      %v2401 = vshrl.u32 %v2400, 7
      %v2402 = vsub.s32 %v2399, %v2401
      %v2403 = vrot.slane %v2389, %v2402
      %v2404 = vcombine.low %v2369, %v2377
      %v2405 = vcombine.high %v2369, %v2377
      %v2407 = vunpack.c.l.s4 1983009808
      %v2408 = vunpack.c.0.s8 %v2407
      %v2409 = vlaneseq
      %v2410 = vshrl.u32 %v2409, 7
      %v2411 = vsub.s32 %v2408, %v2410
      %v2412 = vrot.slane %v2404, %v2411
      %v2414 = vunpack.c.l.s4 1983009808
      %v2415 = vunpack.c.0.s8 %v2414
      %v2416 = vlaneseq
      %v2417 = vshrl.u32 %v2416, 7
      %v2418 = vsub.s32 %v2415, %v2417
      %v2419 = vrot.slane %v2405, %v2418
      %v2420 = vcombine.low %v2396, %v2412
      %v2421 = vcombine.high %v2396, %v2412
      %v2423 = vunpack.c.l.s4 1934713408
      %v2424 = vunpack.c.0.s8 %v2423
      %v2425 = vlaneseq
      %v2426 = vshrl.u32 %v2425, 7
      %v2427 = vsub.s32 %v2424, %v2426
      %v2428 = vrot.slane %v2420, %v2427
      %v2430 = vunpack.c.l.s4 1934713408
      %v2431 = vunpack.c.0.s8 %v2430
      %v2432 = vlaneseq
      %v2433 = vshrl.u32 %v2432, 7
      %v2434 = vsub.s32 %v2431, %v2433
      %v2435 = vrot.slane %v2421, %v2434
      %v2436 = vcombine.low %v2403, %v2419
      %v2437 = vcombine.high %v2403, %v2419
      %v2439 = vunpack.c.l.s4 1934713408
      %v2440 = vunpack.c.0.s8 %v2439
      %v2441 = vlaneseq
      %v2442 = vshrl.u32 %v2441, 7
      %v2443 = vsub.s32 %v2440, %v2442
      %v2444 = vrot.slane %v2436, %v2443
      %v2446 = vunpack.c.l.s4 1934713408
      %v2447 = vunpack.c.0.s8 %v2446
      %v2448 = vlaneseq
      %v2449 = vshrl.u32 %v2448, 7
      %v2450 = vsub.s32 %v2447, %v2449
      %v2451 = vrot.slane %v2437, %v2450
      %v2452 = vcombine.high %v2428, 0.0
      %v2453 = vcombine.high %v2435, 0.0
      %v2454 = vcombine.high %v2444, 0.0
      %v2455 = vcombine.high %v2451, 0.0
      %v2456 = vcombine.low %v2367, %v2375
      %v2457 = vcombine.high %v2367, %v2375
      %v2459 = vunpack.c.l.s4 1983009808
      %v2460 = vunpack.c.0.s8 %v2459
      %v2461 = vlaneseq
      %v2462 = vshrl.u32 %v2461, 7
      %v2463 = vsub.s32 %v2460, %v2462
      %v2464 = vrot.slane %v2456, %v2463
      %v2466 = vunpack.c.l.s4 1983009808
      %v2467 = vunpack.c.0.s8 %v2466
      %v2468 = vlaneseq
      %v2469 = vshrl.u32 %v2468, 7
      %v2470 = vsub.s32 %v2467, %v2469
      %v2471 = vrot.slane %v2457, %v2470
      %v2472 = vcombine.low %v2371, %v2379
      %v2473 = vcombine.high %v2371, %v2379
      %v2475 = vunpack.c.l.s4 1983009808
      %v2476 = vunpack.c.0.s8 %v2475
      %v2477 = vlaneseq
      %v2478 = vshrl.u32 %v2477, 7
      %v2479 = vsub.s32 %v2476, %v2478
      %v2480 = vrot.slane %v2472, %v2479
      %v2482 = vunpack.c.l.s4 1983009808
      %v2483 = vunpack.c.0.s8 %v2482
      %v2484 = vlaneseq
      %v2485 = vshrl.u32 %v2484, 7
      %v2486 = vsub.s32 %v2483, %v2485
      %v2487 = vrot.slane %v2473, %v2486
      %v2488 = vcombine.low %v2464, %v2480
      %v2489 = vcombine.high %v2464, %v2480
      %v2491 = vunpack.c.l.s4 1934713408
      %v2492 = vunpack.c.0.s8 %v2491
      %v2493 = vlaneseq
      %v2494 = vshrl.u32 %v2493, 7
      %v2495 = vsub.s32 %v2492, %v2494
      %v2496 = vrot.slane %v2488, %v2495
      %v2498 = vunpack.c.l.s4 1934713408
      %v2499 = vunpack.c.0.s8 %v2498
      %v2500 = vlaneseq
      %v2501 = vshrl.u32 %v2500, 7
      %v2502 = vsub.s32 %v2499, %v2501
      %v2503 = vrot.slane %v2489, %v2502
      %v2504 = vcombine.low %v2471, %v2487
      %v2505 = vcombine.high %v2471, %v2487
      %v2507 = vunpack.c.l.s4 1934713408
      %v2508 = vunpack.c.0.s8 %v2507
      %v2509 = vlaneseq
      %v2510 = vshrl.u32 %v2509, 7
      %v2511 = vsub.s32 %v2508, %v2510
      %v2512 = vrot.slane %v2504, %v2511
      %v2514 = vunpack.c.l.s4 1934713408
      %v2515 = vunpack.c.0.s8 %v2514
      %v2516 = vlaneseq
      %v2517 = vshrl.u32 %v2516, 7
      %v2518 = vsub.s32 %v2515, %v2517
      %v2519 = vrot.slane %v2505, %v2518
      %v2520 = vcombine.high %v2496, 0.0
      %v2521 = vcombine.high %v2503, 0.0
      %v2522 = vcombine.high %v2512, 0.0
      %v2523 = vcombine.high %v2519, 0.0
      %2525 = vrot.lane.b32.xlu0 %v2452, 16
      %v2526 = vpop.permute.xlu0 %2525
      %2529 = vrot.lane.b32.xlu0 %v2435, 32
      %v2530 = vpop.permute.xlu0 %2529
      %2533 = vrot.lane.b32.xlu0 %v2453, 48
      %v2534 = vpop.permute.xlu0 %2533
      %2537 = vrot.lane.b32.xlu0 %v2444, 64
      %v2538 = vpop.permute.xlu0 %2537
      %2541 = vrot.lane.b32.xlu0 %v2454, 80
      %v2542 = vpop.permute.xlu0 %2541
      %2545 = vrot.lane.b32.xlu0 %v2451, 96
      %v2546 = vpop.permute.xlu0 %2545
      %2549 = vrot.lane.b32.xlu0 %v2455, 112
      %v2550 = vpop.permute.xlu0 %2549
      %2553 = vrot.lane.b32.xlu0 %v2520, 16
      %v2554 = vpop.permute.xlu0 %2553
      %2557 = vrot.lane.b32.xlu0 %v2503, 32
      %v2558 = vpop.permute.xlu0 %2557
      %2561 = vrot.lane.b32.xlu0 %v2521, 48
      %v2562 = vpop.permute.xlu0 %2561
      %2565 = vrot.lane.b32.xlu0 %v2512, 64
      %v2566 = vpop.permute.xlu0 %2565
      %2569 = vrot.lane.b32.xlu0 %v2522, 80
      %v2570 = vpop.permute.xlu0 %2569
      %2573 = vrot.lane.b32.xlu0 %v2519, 96
      %v2574 = vpop.permute.xlu0 %2573
      %2577 = vrot.lane.b32.xlu0 %v2523, 112
      %v2578 = vpop.permute.xlu0 %2577
      %v2580 = vsel %vm883, %v2428, %v2526
      %v2581 = vsel %vm885, %v2580, %v2530
      %v2582 = vsel %vm887, %v2581, %v2534
      %v2583 = vsel %vm889, %v2582, %v2538
      %v2584 = vsel %vm891, %v2583, %v2542
      %v2585 = vsel %vm893, %v2584, %v2546
      %v2586 = vsel %vm895, %v2585, %v2550
      %v2587 = vsel %vm883, %v2496, %v2554
      %v2588 = vsel %vm885, %v2587, %v2558
      %v2589 = vsel %vm887, %v2588, %v2562
      %v2590 = vsel %vm889, %v2589, %v2566
      %v2591 = vsel %vm891, %v2590, %v2570
      %v2592 = vsel %vm893, %v2591, %v2574
      %v2593 = vsel %vm895, %v2592, %v2578
      %v2596 = vrot.slane %v2586, 4
      %v2597 = vrot.slane %v2593, 4
      %2600 = vst [vmem:[#allocation3 + $0x30] sm:$0xf0] %v2596
      %2601 = vst [vmem:[#allocation3 + $0x38] sm:$0xf0] %v2597
      %v2602 = vld [vmem:[#allocation2 + $0x2] sm:$0xff]
      %v2603 = vld [vmem:[#allocation2 + $0xa] sm:$0xff]
      %v2604 = vld [vmem:[#allocation2 + $0x1a] sm:$0xff]
      %v2605 = vld [vmem:[#allocation2 + $0x22] sm:$0xff]
      %v2606 = vld [vmem:[#allocation2 + $0x32] sm:$0xff]
      %v2607 = vld [vmem:[#allocation2 + $0x3a] sm:$0xff]
      %v2608 = vld [vmem:[#allocation2 + $0x4a] sm:$0xff]
      %v2609 = vld [vmem:[#allocation2 + $0x52] sm:$0xff]
      %2618 = vrot.lane.b32.xlu0 %v2602, 126
      %v2619 = vpop.permute.xlu0 %2618
      %2620 = vrot.lane.b32.xlu0 %v2603, 126
      %v2621 = vpop.permute.xlu0 %2620
      %2622 = vrot.lane.b32.xlu0 %v2604, 126
      %v2623 = vpop.permute.xlu0 %2622
      %2624 = vrot.lane.b32.xlu0 %v2605, 126
      %v2625 = vpop.permute.xlu0 %2624
      %2626 = vrot.lane.b32.xlu0 %v2606, 126
      %v2627 = vpop.permute.xlu0 %2626
      %2628 = vrot.lane.b32.xlu0 %v2607, 126
      %v2629 = vpop.permute.xlu0 %2628
      %2630 = vrot.lane.b32.xlu0 %v2608, 126
      %v2631 = vpop.permute.xlu0 %2630
      %2632 = vrot.lane.b32.xlu0 %v2609, 126
      %v2633 = vpop.permute.xlu0 %2632
      %v2642 = vcombine.low %v2619, %v2627
      %v2643 = vcombine.high %v2619, %v2627
      %v2645 = vunpack.c.l.s4 1983009808
      %v2646 = vunpack.c.0.s8 %v2645
      %v2647 = vlaneseq
      %v2648 = vshrl.u32 %v2647, 7
      %v2649 = vsub.s32 %v2646, %v2648
      %v2650 = vrot.slane %v2642, %v2649
      %v2652 = vunpack.c.l.s4 1983009808
      %v2653 = vunpack.c.0.s8 %v2652
      %v2654 = vlaneseq
      %v2655 = vshrl.u32 %v2654, 7
      %v2656 = vsub.s32 %v2653, %v2655
      %v2657 = vrot.slane %v2643, %v2656
      %v2658 = vcombine.low %v2623, %v2631
      %v2659 = vcombine.high %v2623, %v2631
      %v2661 = vunpack.c.l.s4 1983009808
      %v2662 = vunpack.c.0.s8 %v2661
      %v2663 = vlaneseq
      %v2664 = vshrl.u32 %v2663, 7
      %v2665 = vsub.s32 %v2662, %v2664
      %v2666 = vrot.slane %v2658, %v2665
      %v2668 = vunpack.c.l.s4 1983009808
      %v2669 = vunpack.c.0.s8 %v2668
      %v2670 = vlaneseq
      %v2671 = vshrl.u32 %v2670, 7
      %v2672 = vsub.s32 %v2669, %v2671
      %v2673 = vrot.slane %v2659, %v2672
      %v2674 = vcombine.low %v2650, %v2666
      %v2675 = vcombine.high %v2650, %v2666
      %v2677 = vunpack.c.l.s4 1934713408
      %v2678 = vunpack.c.0.s8 %v2677
      %v2679 = vlaneseq
      %v2680 = vshrl.u32 %v2679, 7
      %v2681 = vsub.s32 %v2678, %v2680
      %v2682 = vrot.slane %v2674, %v2681
      %v2684 = vunpack.c.l.s4 1934713408
      %v2685 = vunpack.c.0.s8 %v2684
      %v2686 = vlaneseq
      %v2687 = vshrl.u32 %v2686, 7
      %v2688 = vsub.s32 %v2685, %v2687
      %v2689 = vrot.slane %v2675, %v2688
      %v2690 = vcombine.low %v2657, %v2673
      %v2691 = vcombine.high %v2657, %v2673
      %v2693 = vunpack.c.l.s4 1934713408
      %v2694 = vunpack.c.0.s8 %v2693
      %v2695 = vlaneseq
      %v2696 = vshrl.u32 %v2695, 7
      %v2697 = vsub.s32 %v2694, %v2696
      %v2698 = vrot.slane %v2690, %v2697
      %v2700 = vunpack.c.l.s4 1934713408
      %v2701 = vunpack.c.0.s8 %v2700
      %v2702 = vlaneseq
      %v2703 = vshrl.u32 %v2702, 7
      %v2704 = vsub.s32 %v2701, %v2703
      %v2705 = vrot.slane %v2691, %v2704
      %v2706 = vcombine.high %v2682, 0.0
      %v2707 = vcombine.high %v2689, 0.0
      %v2708 = vcombine.high %v2698, 0.0
      %v2709 = vcombine.high %v2705, 0.0
      %v2710 = vcombine.low %v2621, %v2629
      %v2711 = vcombine.high %v2621, %v2629
      %v2713 = vunpack.c.l.s4 1983009808
      %v2714 = vunpack.c.0.s8 %v2713
      %v2715 = vlaneseq
      %v2716 = vshrl.u32 %v2715, 7
      %v2717 = vsub.s32 %v2714, %v2716
      %v2718 = vrot.slane %v2710, %v2717
      %v2720 = vunpack.c.l.s4 1983009808
      %v2721 = vunpack.c.0.s8 %v2720
      %v2722 = vlaneseq
      %v2723 = vshrl.u32 %v2722, 7
      %v2724 = vsub.s32 %v2721, %v2723
      %v2725 = vrot.slane %v2711, %v2724
      %v2726 = vcombine.low %v2625, %v2633
      %v2727 = vcombine.high %v2625, %v2633
      %v2729 = vunpack.c.l.s4 1983009808
      %v2730 = vunpack.c.0.s8 %v2729
      %v2731 = vlaneseq
      %v2732 = vshrl.u32 %v2731, 7
      %v2733 = vsub.s32 %v2730, %v2732
      %v2734 = vrot.slane %v2726, %v2733
      %v2736 = vunpack.c.l.s4 1983009808
      %v2737 = vunpack.c.0.s8 %v2736
      %v2738 = vlaneseq
      %v2739 = vshrl.u32 %v2738, 7
      %v2740 = vsub.s32 %v2737, %v2739
      %v2741 = vrot.slane %v2727, %v2740
      %v2742 = vcombine.low %v2718, %v2734
      %v2743 = vcombine.high %v2718, %v2734
      %v2745 = vunpack.c.l.s4 1934713408
      %v2746 = vunpack.c.0.s8 %v2745
      %v2747 = vlaneseq
      %v2748 = vshrl.u32 %v2747, 7
      %v2749 = vsub.s32 %v2746, %v2748
      %v2750 = vrot.slane %v2742, %v2749
      %v2752 = vunpack.c.l.s4 1934713408
      %v2753 = vunpack.c.0.s8 %v2752
      %v2754 = vlaneseq
      %v2755 = vshrl.u32 %v2754, 7
      %v2756 = vsub.s32 %v2753, %v2755
      %v2757 = vrot.slane %v2743, %v2756
      %v2758 = vcombine.low %v2725, %v2741
      %v2759 = vcombine.high %v2725, %v2741
      %v2761 = vunpack.c.l.s4 1934713408
      %v2762 = vunpack.c.0.s8 %v2761
      %v2763 = vlaneseq
      %v2764 = vshrl.u32 %v2763, 7
      %v2765 = vsub.s32 %v2762, %v2764
      %v2766 = vrot.slane %v2758, %v2765
      %v2768 = vunpack.c.l.s4 1934713408
      %v2769 = vunpack.c.0.s8 %v2768
      %v2770 = vlaneseq
      %v2771 = vshrl.u32 %v2770, 7
      %v2772 = vsub.s32 %v2769, %v2771
      %v2773 = vrot.slane %v2759, %v2772
      %v2774 = vcombine.high %v2750, 0.0
      %v2775 = vcombine.high %v2757, 0.0
      %v2776 = vcombine.high %v2766, 0.0
      %v2777 = vcombine.high %v2773, 0.0
      %2779 = vrot.lane.b32.xlu0 %v2706, 16
      %v2780 = vpop.permute.xlu0 %2779
      %2783 = vrot.lane.b32.xlu0 %v2689, 32
      %v2784 = vpop.permute.xlu0 %2783
      %2787 = vrot.lane.b32.xlu0 %v2707, 48
      %v2788 = vpop.permute.xlu0 %2787
      %2791 = vrot.lane.b32.xlu0 %v2698, 64
      %v2792 = vpop.permute.xlu0 %2791
      %2795 = vrot.lane.b32.xlu0 %v2708, 80
      %v2796 = vpop.permute.xlu0 %2795
      %2799 = vrot.lane.b32.xlu0 %v2705, 96
      %v2800 = vpop.permute.xlu0 %2799
      %2803 = vrot.lane.b32.xlu0 %v2709, 112
      %v2804 = vpop.permute.xlu0 %2803
      %2807 = vrot.lane.b32.xlu0 %v2774, 16
      %v2808 = vpop.permute.xlu0 %2807
      %2811 = vrot.lane.b32.xlu0 %v2757, 32
      %v2812 = vpop.permute.xlu0 %2811
      %2815 = vrot.lane.b32.xlu0 %v2775, 48
      %v2816 = vpop.permute.xlu0 %2815
      %2819 = vrot.lane.b32.xlu0 %v2766, 64
      %v2820 = vpop.permute.xlu0 %2819
      %2823 = vrot.lane.b32.xlu0 %v2776, 80
      %v2824 = vpop.permute.xlu0 %2823
      %2827 = vrot.lane.b32.xlu0 %v2773, 96
      %v2828 = vpop.permute.xlu0 %2827
      %2831 = vrot.lane.b32.xlu0 %v2777, 112
      %v2832 = vpop.permute.xlu0 %2831
      %v2834 = vsel %vm883, %v2682, %v2780
      %v2835 = vsel %vm885, %v2834, %v2784
      %v2836 = vsel %vm887, %v2835, %v2788
      %v2837 = vsel %vm889, %v2836, %v2792
      %v2838 = vsel %vm891, %v2837, %v2796
      %v2839 = vsel %vm893, %v2838, %v2800
      %v2840 = vsel %vm895, %v2839, %v2804
      %v2841 = vsel %vm883, %v2750, %v2808
      %v2842 = vsel %vm885, %v2841, %v2812
      %v2843 = vsel %vm887, %v2842, %v2816
      %v2844 = vsel %vm889, %v2843, %v2820
      %v2845 = vsel %vm891, %v2844, %v2824
      %v2846 = vsel %vm893, %v2845, %v2828
      %v2847 = vsel %vm895, %v2846, %v2832
      %2848 = vst [vmem:[#allocation3 + $0x40] sm:$0xf] %v2840
      %2849 = vst [vmem:[#allocation3 + $0x48] sm:$0xf] %v2847
      %v2850 = vld [vmem:[%s3] sm:$0xf]
      %v2851 = vld [vmem:[#allocation3] sm:$0xff]
      %v2852 = vld [vmem:[#allocation3 + $0x8] sm:$0xff]
      %v2853 = vld [vmem:[#allocation3 + $0x10] sm:$0xff]
      %v2854 = vld [vmem:[#allocation3 + $0x18] sm:$0xff]
      %v2855 = vld [vmem:[#allocation3 + $0x20] sm:$0xff]
      %v2856 = vld [vmem:[#allocation3 + $0x28] sm:$0xff]
      %v2857 = vld [vmem:[#allocation3 + $0x30] sm:$0xff]
      %v2858 = vld [vmem:[#allocation3 + $0x38] sm:$0xff]
      %v2859 = vld [vmem:[#allocation3 + $0x40] sm:$0xf]
      %v2860 = vld [vmem:[#allocation3 + $0x48] sm:$0xf]
      %v2861 = vld [vmem:[%s4] sm:$0xf]
      %2863 = vset.pattern.permute.xlu0 0
      %2864 = vperm.xlu0 %2863, %v2861
      %v2865 = vpop.permute.xlu0 %2864
      %vm2867 = vcmask 293888
      %v2869 = vsel %vm2867, %v2850, 0
      %v2872 = vsel %vm347, %v2859, 0
      %v2875 = vsel %vm347, %v2860, 0
      %2877 = vmatprep.subr.mxu0 %v2852
      %2878 = vmatpush1.msra.mxu0 %v2851
      %2879 = vmatprep.subr.mxu0 %v2854
      %2880 = vmatpush1.msra.mxu0 %v2853
      %2881 = vmatprep.subr.mxu0 %v2856
      %2882 = vmatpush1.msra.mxu0 %v2855
      %2883 = vmatprep.subr.mxu0 %v2858
      %2884 = vmatpush1.msra.mxu0 %v2857
      %2885 = vmatprep.subr.mxu0 %v2875
      %2886 = vmatpush1.msra.mxu0 %v2872
      %2887 = vmatprep.subr.mxu0 0.0
      %2888 = vmatpush1.msra.mxu0 0.0
      %2889 = vmatprep.subr.mxu0 0.0
      %2890 = vmatpush1.msra.mxu0 0.0
      %2891 = vmatprep.subr.mxu0 0.0
      %2892 = vmatpush1.msra.mxu0 0.0
      %2893 = vmatprep.subr.mxu0 0.0
      %2894 = vmatpush1.msra.mxu0 0.0
      %2895 = vmatprep.subr.mxu0 0.0
      %2896 = vmatpush1.msra.mxu0 0.0
      %2897 = vmatprep.subr.mxu0 0.0
      %2898 = vmatpush1.msra.mxu0 0.0
      %2899 = vmatprep.subr.mxu0 0.0
      %2900 = vmatpush1.msra.mxu0 0.0
      %2901 = vmatprep.subr.mxu0 0.0
      %2902 = vmatpush1.msra.mxu0 0.0
      %2903 = vmatprep.subr.mxu0 0.0
      %2904 = vmatpush1.msra.mxu0 0.0
      %2905 = vmatprep.subr.mxu0 0.0
      %2906 = vmatpush1.msra.mxu0 0.0
      %2907 = vmatprep.subr.mxu0 0.0
      %2908 = vmatpush1.msra.mxu0 0.0
      %2909 = vmatprep.subr.mxu0 0.0
      %2910 = vmatpush1.msra.mxu0 0.0
      %2911 = vmatprep.subr.mxu0 0.0
      %2912 = vmatpush1.msra.mxu0 0.0
      %2913 = vmatprep.subr.mxu0 0.0
      %2914 = vmatpush1.msra.mxu0 0.0
      %2915 = vmatprep.subr.mxu0 0.0
      %2916 = vmatpush1.msra.mxu0 0.0
      %2917 = vmatprep.subr.mxu0 0.0
      %2918 = vmatpush1.msra.mxu0 0.0
      %2919 = vmatprep.subr.mxu0 0.0
      %2920 = vmatpush1.msra.mxu0 0.0
      %2921 = vmatprep.subr.mxu0 0.0
      %2922 = vmatpush1.msra.mxu0 0.0
      %2923 = vmatprep.subr.mxu0 0.0
      %2924 = vmatpush1.msra.mxu0 0.0
      %2925 = vmatprep.subr.mxu0 0.0
      %2926 = vmatpush1.msra.mxu0 0.0
      %2927 = vmatprep.subr.mxu0 0.0
      %2928 = vmatpush1.msra.mxu0 0.0
      %2929 = vmatprep.subr.mxu0 0.0
      %2930 = vmatpush1.msra.mxu0 0.0
      %2931 = vmatprep.subr.mxu0 0.0
      %2932 = vmatpush1.msra.mxu0 0.0
      %2933 = vmatprep.subr.mxu0 0.0
      %2934 = vmatpush1.msra.mxu0 0.0
      %2935 = vmatprep.subr.mxu0 0.0
      %2936 = vmatpush1.msra.mxu0 0.0
      %2937 = vmatprep.subr.mxu0 0.0
      %2938 = vmatpush1.msra.mxu0 0.0
      %2939 = vmatprep.subr.mxu0 0.0
      %2940 = vmatpush1.msra.mxu0 0.0
      %2941 = vmatprep.mubr.f32.mxu0 0.0
      %2942 = vmatmul.mubr.f32.gmra.mrb[0].mxu0 %v2869
      %v2943 = vpop.f32.mrb[0].mxu0
      %v2944 = vadd.f32 %v2865, %v2943
      %v2945 = vpop.f32.mrb[0].mxu0
      %v2946 = vadd.f32 %v2865, %v2945
      %2947 = vdwg.mxu0
      %v2948 = vmax.f32 %v2944, 0.0
      %v2949 = vmax.f32 %v2946, 0.0
      %v2950 = vld [vmem:[%s5] sm:$0xff]
      %v2951 = vld [vmem:[%s5 + $0x8] sm:$0xff]
      %v2952 = vld [vmem:[%s6] sm:$0xff]
      %v2953 = vld [vmem:[%s6 + $0x8] sm:$0xff]
      %2955 = vset.pattern.permute.xlu0 0
      %2956 = vperm.xlu0 %2955, %v2952
      %v2957 = vpop.permute.xlu0 %2956
      %2960 = vset.pattern.permute.xlu0 0
      %2961 = vperm.xlu0 %2960, %v2953
      %v2962 = vpop.permute.xlu0 %2961
      %v2965 = vsel %vm343, %v2950, 0
      %v2968 = vsel %vm343, %v2951, 0
      %v2971 = vsel %vm347, %v2948, 0
      %v2974 = vsel %vm347, %v2949, 0
      %2976 = vmatprep.subr.mxu0 %v2974
      %2977 = vmatpush1.msra.mxu0 %v2971
      %2978 = vmatprep.subr.mxu0 0.0
      %2979 = vmatpush1.msra.mxu0 0.0
      %2980 = vmatprep.subr.mxu0 0.0
      %2981 = vmatpush1.msra.mxu0 0.0
      %2982 = vmatprep.subr.mxu0 0.0
      %2983 = vmatpush1.msra.mxu0 0.0
      %2984 = vmatprep.subr.mxu0 0.0
      %2985 = vmatpush1.msra.mxu0 0.0
      %2986 = vmatprep.subr.mxu0 0.0
      %2987 = vmatpush1.msra.mxu0 0.0
      %2988 = vmatprep.subr.mxu0 0.0
      %2989 = vmatpush1.msra.mxu0 0.0
      %2990 = vmatprep.subr.mxu0 0.0
      %2991 = vmatpush1.msra.mxu0 0.0
      %2992 = vmatprep.subr.mxu0 0.0
      %2993 = vmatpush1.msra.mxu0 0.0
      %2994 = vmatprep.subr.mxu0 0.0
      %2995 = vmatpush1.msra.mxu0 0.0
      %2996 = vmatprep.subr.mxu0 0.0
      %2997 = vmatpush1.msra.mxu0 0.0
      %2998 = vmatprep.subr.mxu0 0.0
      %2999 = vmatpush1.msra.mxu0 0.0
      %3000 = vmatprep.subr.mxu0 0.0
      %3001 = vmatpush1.msra.mxu0 0.0
      %3002 = vmatprep.subr.mxu0 0.0
      %3003 = vmatpush1.msra.mxu0 0.0
      %3004 = vmatprep.subr.mxu0 0.0
      %3005 = vmatpush1.msra.mxu0 0.0
      %3006 = vmatprep.subr.mxu0 0.0
      %3007 = vmatpush1.msra.mxu0 0.0
      %3008 = vmatprep.subr.mxu0 0.0
      %3009 = vmatpush1.msra.mxu0 0.0
      %3010 = vmatprep.subr.mxu0 0.0
      %3011 = vmatpush1.msra.mxu0 0.0
      %3012 = vmatprep.subr.mxu0 0.0
      %3013 = vmatpush1.msra.mxu0 0.0
      %3014 = vmatprep.subr.mxu0 0.0
      %3015 = vmatpush1.msra.mxu0 0.0
      %3016 = vmatprep.subr.mxu0 0.0
      %3017 = vmatpush1.msra.mxu0 0.0
      %3018 = vmatprep.subr.mxu0 0.0
      %3019 = vmatpush1.msra.mxu0 0.0
      %3020 = vmatprep.subr.mxu0 0.0
      %3021 = vmatpush1.msra.mxu0 0.0
      %3022 = vmatprep.subr.mxu0 0.0
      %3023 = vmatpush1.msra.mxu0 0.0
      %3024 = vmatprep.subr.mxu0 0.0
      %3025 = vmatpush1.msra.mxu0 0.0
      %3026 = vmatprep.subr.mxu0 0.0
      %3027 = vmatpush1.msra.mxu0 0.0
      %3028 = vmatprep.subr.mxu0 0.0
      %3029 = vmatpush1.msra.mxu0 0.0
      %3030 = vmatprep.subr.mxu0 0.0
      %3031 = vmatpush1.msra.mxu0 0.0
      %3032 = vmatprep.subr.mxu0 0.0
      %3033 = vmatpush1.msra.mxu0 0.0
      %3034 = vmatprep.subr.mxu0 0.0
      %3035 = vmatpush1.msra.mxu0 0.0
      %3036 = vmatprep.subr.mxu0 0.0
      %3037 = vmatpush1.msra.mxu0 0.0
      %3038 = vmatprep.subr.mxu0 0.0
      %3039 = vmatpush1.msra.mxu0 0.0
      %3040 = vmatprep.mubr.f32.mxu0 0.0
      %3041 = vmatmul.mubr.f32.gmra.mrb[0].mxu0 %v2965
      %v3042 = vpop.f32.mrb[0].mxu0
      %v3043 = vadd.f32 %v2957, %v3042
      %v3044 = vpop.f32.mrb[0].mxu0
      %v3045 = vadd.f32 %v2957, %v3044
      %3046 = vmatprep.mubr.f32.mxu0 0.0
      %3047 = vmatmul.mubr.f32.gmra.mrb[0].mxu0 %v2968
      %v3048 = vpop.f32.mrb[0].mxu0
      %v3049 = vadd.f32 %v2962, %v3048
      %v3050 = vpop.f32.mrb[0].mxu0
      %v3051 = vadd.f32 %v2962, %v3050
      %3052 = vdwg.mxu0
      %v3053 = vld [vmem:[%s7] sm:$0xff]
      %v3054 = vld [vmem:[%s7 + $0x8] sm:$0xff]
      %v3055 = vld [vmem:[%s8] sm:$0xff]
      %v3056 = vld [vmem:[%s8 + $0x8] sm:$0xff]
      %3058 = vset.pattern.permute.xlu0 0
      %3059 = vperm.xlu0 %3058, %v3055
      %v3060 = vpop.permute.xlu0 %3059
      %3063 = vset.pattern.permute.xlu0 0
      %3064 = vperm.xlu0 %3063, %v3056
      %v3065 = vpop.permute.xlu0 %3064
      %v3068 = vsel %vm343, %v3053, 0
      %v3071 = vsel %vm343, %v3054, 0
      %3073 = vmatprep.subr.mxu0 %v350
      %3074 = vmatpush1.msra.mxu0 %v348
      %3075 = vmatprep.subr.mxu0 0.0
      %3076 = vmatpush1.msra.mxu0 0.0
      %3077 = vmatprep.subr.mxu0 0.0
      %3078 = vmatpush1.msra.mxu0 0.0
      %3079 = vmatprep.subr.mxu0 0.0
      %3080 = vmatpush1.msra.mxu0 0.0
      %3081 = vmatprep.subr.mxu0 0.0
      %3082 = vmatpush1.msra.mxu0 0.0
      %3083 = vmatprep.subr.mxu0 0.0
      %3084 = vmatpush1.msra.mxu0 0.0
      %3085 = vmatprep.subr.mxu0 0.0
      %3086 = vmatpush1.msra.mxu0 0.0
      %3087 = vmatprep.subr.mxu0 0.0
      %3088 = vmatpush1.msra.mxu0 0.0
      %3089 = vmatprep.subr.mxu0 0.0
      %3090 = vmatpush1.msra.mxu0 0.0
      %3091 = vmatprep.subr.mxu0 0.0
      %3092 = vmatpush1.msra.mxu0 0.0
      %3093 = vmatprep.subr.mxu0 0.0
      %3094 = vmatpush1.msra.mxu0 0.0
      %3095 = vmatprep.subr.mxu0 0.0
      %3096 = vmatpush1.msra.mxu0 0.0
      %3097 = vmatprep.subr.mxu0 0.0
      %3098 = vmatpush1.msra.mxu0 0.0
      %3099 = vmatprep.subr.mxu0 0.0
      %3100 = vmatpush1.msra.mxu0 0.0
      %3101 = vmatprep.subr.mxu0 0.0
      %3102 = vmatpush1.msra.mxu0 0.0
      %3103 = vmatprep.subr.mxu0 0.0
      %3104 = vmatpush1.msra.mxu0 0.0
      %3105 = vmatprep.subr.mxu0 0.0
      %3106 = vmatpush1.msra.mxu0 0.0
      %3107 = vmatprep.subr.mxu0 0.0
      %3108 = vmatpush1.msra.mxu0 0.0
      %3109 = vmatprep.subr.mxu0 0.0
      %3110 = vmatpush1.msra.mxu0 0.0
      %3111 = vmatprep.subr.mxu0 0.0
      %3112 = vmatpush1.msra.mxu0 0.0
      %3113 = vmatprep.subr.mxu0 0.0
      %3114 = vmatpush1.msra.mxu0 0.0
      %3115 = vmatprep.subr.mxu0 0.0
      %3116 = vmatpush1.msra.mxu0 0.0
      %3117 = vmatprep.subr.mxu0 0.0
      %3118 = vmatpush1.msra.mxu0 0.0
      %3119 = vmatprep.subr.mxu0 0.0
      %3120 = vmatpush1.msra.mxu0 0.0
      %3121 = vmatprep.subr.mxu0 0.0
      %3122 = vmatpush1.msra.mxu0 0.0
      %3123 = vmatprep.subr.mxu0 0.0
      %3124 = vmatpush1.msra.mxu0 0.0
      %3125 = vmatprep.subr.mxu0 0.0
      %3126 = vmatpush1.msra.mxu0 0.0
      %3127 = vmatprep.subr.mxu0 0.0
      %3128 = vmatpush1.msra.mxu0 0.0
      %3129 = vmatprep.subr.mxu0 0.0
      %3130 = vmatpush1.msra.mxu0 0.0
      %3131 = vmatprep.subr.mxu0 0.0
      %3132 = vmatpush1.msra.mxu0 0.0
      %3133 = vmatprep.subr.mxu0 0.0
      %3134 = vmatpush1.msra.mxu0 0.0
      %3135 = vmatprep.subr.mxu0 0.0
      %3136 = vmatpush1.msra.mxu0 0.0
      %3137 = vmatprep.mubr.f32.mxu0 0.0
      %3138 = vmatmul.mubr.f32.gmra.mrb[0].mxu0 %v3068
      %v3139 = vpop.f32.mrb[0].mxu0
      %v3140 = vadd.f32 %v3060, %v3139
      %v3141 = vpop.f32.mrb[0].mxu0
      %v3142 = vadd.f32 %v3060, %v3141
      %3143 = vmatprep.mubr.f32.mxu0 0.0
      %3144 = vmatmul.mubr.f32.gmra.mrb[0].mxu0 %v3071
      %v3145 = vpop.f32.mrb[0].mxu0
      %v3146 = vadd.f32 %v3065, %v3145
      %v3147 = vpop.f32.mrb[0].mxu0
      %v3148 = vadd.f32 %v3065, %v3147
      %3149 = vdwg.mxu0
      %v3150 = vadd.f32 %v3043, %v3140
      %v3151 = vadd.f32 %v3045, %v3142
      %v3152 = vadd.f32 %v3049, %v3146
      %v3153 = vadd.f32 %v3051, %v3148
      %v3154 = vmax.f32 %v3150, 0.0
      %v3155 = vmax.f32 %v3151, 0.0
      %v3156 = vmax.f32 %v3152, 0.0
      %v3157 = vmax.f32 %v3153, 0.0
      %3158 = vst [vmem:[%s332] sm:$0xff] %v3154
      %3159 = vst [vmem:[%s332 + $0x8] sm:$0xff] %v3155
      %3160 = vst [vmem:[%s332 + $0x10] sm:$0xff] %v3156
      %3161 = vst [vmem:[%s332 + $0x18] sm:$0xff] %v3157
      %p3162 = scmp.lt.s32.totalorder %s20, 1
      %s3163 = scalar_select %p3162, %s20, 1
      %s3164 = smul.addr %s3163, 4
      %s3165 = smul.addr %s3164, 8
      %s3166 = scalar_lea.vmem %s9, %s3165
      // Predicated region
      $region57: #{bottleneck_pallas.1} parent=55 // pred_check
        %p3167 = pneg %p232
      $region58: #{bottleneck_pallas.1} parent=55 // pred_check_branch
        %3169 = sbr.rel (%p3167) target = $region60
      $region59: #{bottleneck_pallas.1} parent=55 // pred_region
        _
      $region60: #{bottleneck_pallas.1} parent=55 // pred_fallthru
        _
    $region56: #{bottleneck_pallas.1} parent=5 // pred_fallthru
      _
    %p3170 = scmp.le.s32.totalorder 2, %s15
    // Predicated region
    $region61: #{bottleneck_pallas.1} parent=5 // pred_check
      %p3171 = pneg %p3170
    $region62: #{bottleneck_pallas.1} parent=5 // pred_check_branch
      %3173 = sbr.rel (%p3171) target = $region64
    $region63: #{bottleneck_pallas.1} parent=5 // pred_region
      %s3174 = ssub.s32 %s15, 2
      // Predicated region
      $region65: #{bottleneck_pallas.1} parent=63 // pred_check
        %p3175 = pneg %p238
      $region66: #{bottleneck_pallas.1} parent=63 // pred_check_branch
        %3177 = sbr.rel (%p3175) target = $region68
      $region67: #{bottleneck_pallas.1} parent=63 // pred_region
        %p3178 = scmp.lt.s32.totalorder %s21, 1
        %s3179 = scalar_select %p3178, %s21, 1
        %s3180 = smul.addr %s3179, 4
        %s3181 = smul.addr %s3180, 8
        %s3182 = scalar_lea.vmem %s9, %s3181
      $region68: #{bottleneck_pallas.1} parent=63 // pred_fallthru
        _
    $region64: #{bottleneck_pallas.1} parent=5 // pred_fallthru
      _
  $region6: #{bottleneck_pallas.1} parent=0 // loop_footer
    %s19 = sadd.s32 1, %s15
  $region7: #{bottleneck_pallas.1} parent=0 // loop_footer_branch
    %14 = sbr.rel target = $region3
  $region8: #{bottleneck_pallas.1} parent=0 // loop_exit
    _

</llo_original>
